<compile_context>
chip_gen: v5e
topology: v5e:2x2
jax: 0.10.0
libtpu: 0.0.40
codegen_flags: <defaults>
</compile_context>

<pallas_src>
import jax
import jax.numpy as jnp
import numpy as np
from jax.experimental import pallas as pl
from jax.experimental.pallas import tpu as pltpu


def _make_lstm_kernel(num_layers, hidden_size, seq_len, batch_pad):
    """Builds the Pallas kernel body.

    Ref order: lengths(Bp,1), x_flat(T*Bp,I), [Wih_l, Whh_l, b_l] * L, out(Bp,H)
    """
    L, H, T, Bp = num_layers, hidden_size, seq_len, batch_pad

    def kernel(len_ref, x_ref, *args):
        w_refs = args[:3 * L]
        out_ref = args[3 * L]

        lens_m1 = len_ref[...] - 1                 # (Bp, 1) int32, last valid timestep

        seq = x_ref[...]                           # (T*Bp, in_dim) current layer input
        last = jnp.zeros((Bp, H), jnp.float32)     # gathered top-layer h at t = len-1

        # Static unroll over layers (L is small); gate order matches PyTorch: i, f, g, o.
        for l in range(L):
            wih = w_refs[3 * l][...]               # (in_dim, 4H)
            whh = w_refs[3 * l + 1][...]           # (H, 4H)
            b = w_refs[3 * l + 2][...]             # (1, 4H) fused b_ih + b_hh

            # Hoisted input projection: ONE MXU matmul over the whole sequence.
            gx = jnp.dot(seq, wih, preferred_element_type=jnp.float32) + b   # (T*Bp, 4H)

            h = jnp.zeros((Bp, H), jnp.float32)
            c = jnp.zeros((Bp, H), jnp.float32)
            hs = []
            # Serial recurrence: only h @ Whh remains on the critical path.
            for t in range(T):
                gates = gx[t * Bp:(t + 1) * Bp, :] + jnp.dot(
                    h, whh, preferred_element_type=jnp.float32)              # (Bp, 4H)
                # Full-width activations (one sigmoid + one tanh on the whole tile),
                # then take H-wide slices.
                sig = jax.nn.sigmoid(gates)
                th = jnp.tanh(gates)
                i_g = sig[:, 0:H]
                f_g = sig[:, H:2 * H]
                g_g = th[:, 2 * H:3 * H]
                o_g = sig[:, 3 * H:4 * H]
                c = f_g * c + i_g * g_g
                h = o_g * jnp.tanh(c)
                if l == L - 1:
                    # Capture top-layer hidden state at the last valid timestep.
                    last = jnp.where(lens_m1 == t, h, last)
                else:
                    hs.append(h)

            if l < L - 1:
                seq = jnp.concatenate(hs, axis=0)                            # (T*Bp, H)

        out_ref[...] = last

    return kernel


def lstm_regressor_forward(x, lengths, layer_weights, w_fc, b_fc):
    """x: (B, T, I) float32, lengths: (B,) int, layer_weights: list of (Wih (in,4H), Whh (H,4H), b (1,4H))."""
    B, T, I = x.shape
    H = layer_weights[0][1].shape[0]
    L = len(layer_weights)

    # Pad batch to a full 8-row f32 sublane tile; padded rows get length 1 and are dropped.
    Bp = max(8, ((B + 7) // 8) * 8)

    x_tbi = jnp.transpose(x, (1, 0, 2)).astype(jnp.float32)          # (T, B, I)
    lens = lengths.astype(jnp.int32)
    if Bp != B:
        x_tbi = jnp.pad(x_tbi, ((0, 0), (0, Bp - B), (0, 0)))
        lens = jnp.pad(lens, (0, Bp - B), constant_values=1)
    x_flat = x_tbi.reshape(T * Bp, I)                                # time rows flattened
    len2d = lens.reshape(Bp, 1)

    flat_w = []
    for (wih, whh, b) in layer_weights:
        flat_w += [wih, whh, b]

    in_specs = [
        pl.BlockSpec((Bp, 1), lambda i: (0, 0)),                     # lengths, resident
        pl.BlockSpec((T * Bp, I), lambda i: (0, 0)),                 # full sequence, resident
    ] + [
        pl.BlockSpec(w.shape, lambda i, nd=w.ndim: (0,) * nd)        # weights, resident
        for w in flat_w
    ]

    kernel = _make_lstm_kernel(L, H, T, Bp)

    last = pl.pallas_call(
        kernel,
        out_shape=jax.ShapeDtypeStruct((Bp, H), jnp.float32),
        grid=(1,),
        in_specs=in_specs,
        out_specs=pl.BlockSpec((Bp, H), lambda i: (0, 0)),
        compiler_params=pltpu.CompilerParams(
            dimension_semantics=("arbitrary",),
        ),
    )(len2d, x_flat, *flat_w)

    # Tiny (B,H)@(H,O) Linear head done by XLA (kernel output stays lane-dense).
    return last[:B] @ w_fc + b_fc


def init_params(key, input_size, hidden_size, num_layers, output_size):
    """Deterministic synthetic init mirroring nn.LSTM / nn.Linear parameter shapes."""
    layer_weights = []
    k_lstm = 1.0 / np.sqrt(hidden_size)
    for l in range(num_layers):
        in_dim = input_size if l == 0 else hidden_size
        key, k1, k2, k3, k4 = jax.random.split(key, 5)
        w_ih = jax.random.uniform(k1, (4 * hidden_size, in_dim), jnp.float32, -k_lstm, k_lstm)
        w_hh = jax.random.uniform(k2, (4 * hidden_size, hidden_size), jnp.float32, -k_lstm, k_lstm)
        b_ih = jax.random.uniform(k3, (4 * hidden_size,), jnp.float32, -k_lstm, k_lstm)
        b_hh = jax.random.uniform(k4, (4 * hidden_size,), jnp.float32, -k_lstm, k_lstm)
        # kernel expects (in, 4H) layout and fused bias (1, 4H)
        layer_weights.append((w_ih.T, w_hh.T, (b_ih + b_hh).reshape(1, 4 * hidden_size)))
    key, k1, k2 = jax.random.split(key, 3)
    k_fc = 1.0 / np.sqrt(hidden_size)
    w_fc = jax.random.uniform(k1, (output_size, hidden_size), jnp.float32, -k_fc, k_fc)
    b_fc = jax.random.uniform(k2, (output_size,), jnp.float32, -k_fc, k_fc)
    return layer_weights, w_fc.T, b_fc.reshape(1, output_size)


def reference_forward(x, lengths, layer_weights, w_fc, b_fc):
    """Pure-JAX reference of the same math (for a correctness check)."""
    B, T, I = x.shape
    H = layer_weights[0][1].shape[0]
    inp_seq = jnp.transpose(x, (1, 0, 2))  # (T, B, I)
    for (wih, whh, b) in layer_weights:
        def step(carry, x_t):
            h, c = carry
            gates = x_t @ wih + h @ whh + b
            i_g = jax.nn.sigmoid(gates[:, 0:H])
            f_g = jax.nn.sigmoid(gates[:, H:2 * H])
            g_g = jnp.tanh(gates[:, 2 * H:3 * H])
            o_g = jax.nn.sigmoid(gates[:, 3 * H:4 * H])
            c_n = f_g * c + i_g * g_g
            h_n = o_g * jnp.tanh(c_n)
            return (h_n, c_n), h_n
        init = (jnp.zeros((B, H), jnp.float32), jnp.zeros((B, H), jnp.float32))
        _, inp_seq = jax.lax.scan(step, init, inp_seq)
    out_btH = jnp.transpose(inp_seq, (1, 0, 2))            # (B, T, H)
    last = out_btH[jnp.arange(B), lengths - 1]             # gather at t = length-1
    return last @ w_fc + b_fc


if __name__ == "__main__":
    # Small shapes consistent with the module's forward.
    B, T, I, H, L, O = 4, 8, 8, 32, 2, 1

    key = jax.random.PRNGKey(0)
    key, kx = jax.random.split(key)
    x = jax.random.normal(kx, (B, T, I), dtype=jnp.float32)
    lengths = jnp.array([8, 5, 3, 6], dtype=jnp.int32)

    layer_weights, w_fc, b_fc = init_params(key, I, H, L, O)

    out = lstm_regressor_forward(x, lengths, layer_weights, w_fc, b_fc)
    out = jax.block_until_ready(out)

    ref = reference_forward(x, lengths, layer_weights, w_fc, b_fc)
    np.testing.assert_allclose(np.asarray(out), np.asarray(ref), rtol=1e-5, atol=1e-5)

    assert out.shape == (B, O) and out.dtype == jnp.float32
    print("KERNEL_OK")
</pallas_src>

<mosaic_0001>
module attributes {stable_mosaic.version = 11 : i64} {
  func.func @kernel(%arg0: i32, %arg1: memref<8x1xi32, #tpu.memory_space<vmem>>, %arg2: memref<64x8xf32, #tpu.memory_space<vmem>>, %arg3: memref<8x128xf32, #tpu.memory_space<vmem>>, %arg4: memref<32x128xf32, #tpu.memory_space<vmem>>, %arg5: memref<1x128xf32, #tpu.memory_space<vmem>>, %arg6: memref<32x128xf32, #tpu.memory_space<vmem>>, %arg7: memref<32x128xf32, #tpu.memory_space<vmem>>, %arg8: memref<1x128xf32, #tpu.memory_space<vmem>>, %arg9: memref<8x32xf32, #tpu.memory_space<vmem>>) attributes {dimension_semantics = [#tpu.dimension_semantics<arbitrary>], iteration_bounds = array<i64: 1>, scalar_prefetch = 0 : i64, scratch_operands = 0 : i64, tpu.core_type = #tpu.core_type<tc>, window_params = [{pipeline_mode = #tpu.pipeline_mode<synchronous>, transform_indices = @transform_0, window_bounds = array<i64: 8, 1>}, {pipeline_mode = #tpu.pipeline_mode<synchronous>, transform_indices = @transform_1, window_bounds = array<i64: 64, 8>}, {pipeline_mode = #tpu.pipeline_mode<synchronous>, transform_indices = @transform_2, window_bounds = array<i64: 8, 128>}, {pipeline_mode = #tpu.pipeline_mode<synchronous>, transform_indices = @transform_3, window_bounds = array<i64: 32, 128>}, {pipeline_mode = #tpu.pipeline_mode<synchronous>, transform_indices = @transform_4, window_bounds = array<i64: 1, 128>}, {pipeline_mode = #tpu.pipeline_mode<synchronous>, transform_indices = @transform_5, window_bounds = array<i64: 32, 128>}, {pipeline_mode = #tpu.pipeline_mode<synchronous>, transform_indices = @transform_6, window_bounds = array<i64: 32, 128>}, {pipeline_mode = #tpu.pipeline_mode<synchronous>, transform_indices = @transform_7, window_bounds = array<i64: 1, 128>}, {pipeline_mode = #tpu.pipeline_mode<synchronous>, transform_indices = @transform_8, window_bounds = array<i64: 8, 32>}]} {
    %c0 = arith.constant 0 : index
    %c0_0 = arith.constant 0 : index
    %0 = vector.load %arg1[%c0, %c0_0] : memref<8x1xi32, #tpu.memory_space<vmem>>, vector<8x1xi32>
    %c1_i32 = arith.constant 1 : i32
    %1 = vector.broadcast %c1_i32 : i32 to vector<8x1xi32>
    %2 = arith.subi %0, %1 : vector<8x1xi32>
    %c0_1 = arith.constant 0 : index
    %c0_2 = arith.constant 0 : index
    %3 = vector.load %arg2[%c0_1, %c0_2] : memref<64x8xf32, #tpu.memory_space<vmem>>, vector<64x8xf32>
    %cst = arith.constant 0.000000e+00 : f32
    %4 = vector.broadcast %cst : f32 to vector<8x32xf32>
    %c0_3 = arith.constant 0 : index
    %c0_4 = arith.constant 0 : index
    %5 = vector.load %arg3[%c0_3, %c0_4] : memref<8x128xf32, #tpu.memory_space<vmem>>, vector<8x128xf32>
    %c0_5 = arith.constant 0 : index
    %c0_6 = arith.constant 0 : index
    %6 = vector.load %arg4[%c0_5, %c0_6] : memref<32x128xf32, #tpu.memory_space<vmem>>, vector<32x128xf32>
    %c0_7 = arith.constant 0 : index
    %c0_8 = arith.constant 0 : index
    %7 = vector.load %arg5[%c0_7, %c0_8] : memref<1x128xf32, #tpu.memory_space<vmem>>, vector<1x128xf32>
    %cst_9 = arith.constant dense<0.000000e+00> : vector<64x128xf32>
    %8 = tpu.matmul %3, %5, %cst_9 {dimension_numbers = #tpu.dot_dimension_numbers<[1], [0], [0], [1], [0, 0, 1, 1], [], []>} : vector<64x8xf32>, vector<8x128xf32>, vector<64x128xf32> -> vector<64x128xf32>
    %9 = vector.broadcast %7 : vector<1x128xf32> to vector<64x128xf32>
    %10 = arith.addf %8, %9 : vector<64x128xf32>
    %cst_10 = arith.constant 0.000000e+00 : f32
    %11 = vector.broadcast %cst_10 : f32 to vector<8x32xf32>
    %cst_11 = arith.constant 0.000000e+00 : f32
    %12 = vector.broadcast %cst_11 : f32 to vector<8x32xf32>
    %13 = vector.extract_strided_slice %10 {offsets = [0, 0], sizes = [8, 128], strides = [1, 1]} : vector<64x128xf32> to vector<8x128xf32>
    %cst_12 = arith.constant dense<0.000000e+00> : vector<8x128xf32>
    %14 = tpu.matmul %11, %6, %cst_12 {dimension_numbers = #tpu.dot_dimension_numbers<[1], [0], [0], [1], [0, 0, 1, 1], [], []>} : vector<8x32xf32>, vector<32x128xf32>, vector<8x128xf32> -> vector<8x128xf32>
    %15 = arith.addf %13, %14 : vector<8x128xf32>
    %16 = arith.negf %15 : vector<8x128xf32>
    %17 = math.exp %16 : vector<8x128xf32>
    %cst_13 = arith.constant 1.000000e+00 : f32
    %18 = vector.broadcast %cst_13 : f32 to vector<8x128xf32>
    %19 = arith.addf %18, %17 : vector<8x128xf32>
    %20 = arith.divf %18, %19 : vector<8x128xf32>
    %21 = math.tanh %15 : vector<8x128xf32>
    %22 = vector.extract_strided_slice %20 {offsets = [0, 0], sizes = [8, 32], strides = [1, 1]} : vector<8x128xf32> to vector<8x32xf32>
    %23 = vector.extract_strided_slice %20 {offsets = [0, 32], sizes = [8, 32], strides = [1, 1]} : vector<8x128xf32> to vector<8x32xf32>
    %24 = vector.extract_strided_slice %21 {offsets = [0, 64], sizes = [8, 32], strides = [1, 1]} : vector<8x128xf32> to vector<8x32xf32>
    %25 = vector.extract_strided_slice %20 {offsets = [0, 96], sizes = [8, 32], strides = [1, 1]} : vector<8x128xf32> to vector<8x32xf32>
    %26 = arith.mulf %23, %12 : vector<8x32xf32>
    %27 = arith.mulf %22, %24 : vector<8x32xf32>
    %28 = arith.addf %26, %27 : vector<8x32xf32>
    %29 = math.tanh %28 : vector<8x32xf32>
    %30 = arith.mulf %25, %29 : vector<8x32xf32>
    %31 = vector.extract_strided_slice %10 {offsets = [8, 0], sizes = [8, 128], strides = [1, 1]} : vector<64x128xf32> to vector<8x128xf32>
    %cst_14 = arith.constant dense<0.000000e+00> : vector<8x128xf32>
    %32 = tpu.matmul %30, %6, %cst_14 {dimension_numbers = #tpu.dot_dimension_numbers<[1], [0], [0], [1], [0, 0, 1, 1], [], []>} : vector<8x32xf32>, vector<32x128xf32>, vector<8x128xf32> -> vector<8x128xf32>
    %33 = arith.addf %31, %32 : vector<8x128xf32>
    %34 = arith.negf %33 : vector<8x128xf32>
    %35 = math.exp %34 : vector<8x128xf32>
    %cst_15 = arith.constant 1.000000e+00 : f32
    %36 = vector.broadcast %cst_15 : f32 to vector<8x128xf32>
    %37 = arith.addf %36, %35 : vector<8x128xf32>
    %38 = arith.divf %36, %37 : vector<8x128xf32>
    %39 = math.tanh %33 : vector<8x128xf32>
    %40 = vector.extract_strided_slice %38 {offsets = [0, 0], sizes = [8, 32], strides = [1, 1]} : vector<8x128xf32> to vector<8x32xf32>
    %41 = vector.extract_strided_slice %38 {offsets = [0, 32], sizes = [8, 32], strides = [1, 1]} : vector<8x128xf32> to vector<8x32xf32>
    %42 = vector.extract_strided_slice %39 {offsets = [0, 64], sizes = [8, 32], strides = [1, 1]} : vector<8x128xf32> to vector<8x32xf32>
    %43 = vector.extract_strided_slice %38 {offsets = [0, 96], sizes = [8, 32], strides = [1, 1]} : vector<8x128xf32> to vector<8x32xf32>
    %44 = arith.mulf %41, %28 : vector<8x32xf32>
    %45 = arith.mulf %40, %42 : vector<8x32xf32>
    %46 = arith.addf %44, %45 : vector<8x32xf32>
    %47 = math.tanh %46 : vector<8x32xf32>
    %48 = arith.mulf %43, %47 : vector<8x32xf32>
    %49 = vector.extract_strided_slice %10 {offsets = [16, 0], sizes = [8, 128], strides = [1, 1]} : vector<64x128xf32> to vector<8x128xf32>
    %cst_16 = arith.constant dense<0.000000e+00> : vector<8x128xf32>
    %50 = tpu.matmul %48, %6, %cst_16 {dimension_numbers = #tpu.dot_dimension_numbers<[1], [0], [0], [1], [0, 0, 1, 1], [], []>} : vector<8x32xf32>, vector<32x128xf32>, vector<8x128xf32> -> vector<8x128xf32>
    %51 = arith.addf %49, %50 : vector<8x128xf32>
    %52 = arith.negf %51 : vector<8x128xf32>
    %53 = math.exp %52 : vector<8x128xf32>
    %cst_17 = arith.constant 1.000000e+00 : f32
    %54 = vector.broadcast %cst_17 : f32 to vector<8x128xf32>
    %55 = arith.addf %54, %53 : vector<8x128xf32>
    %56 = arith.divf %54, %55 : vector<8x128xf32>
    %57 = math.tanh %51 : vector<8x128xf32>
    %58 = vector.extract_strided_slice %56 {offsets = [0, 0], sizes = [8, 32], strides = [1, 1]} : vector<8x128xf32> to vector<8x32xf32>
    %59 = vector.extract_strided_slice %56 {offsets = [0, 32], sizes = [8, 32], strides = [1, 1]} : vector<8x128xf32> to vector<8x32xf32>
    %60 = vector.extract_strided_slice %57 {offsets = [0, 64], sizes = [8, 32], strides = [1, 1]} : vector<8x128xf32> to vector<8x32xf32>
    %61 = vector.extract_strided_slice %56 {offsets = [0, 96], sizes = [8, 32], strides = [1, 1]} : vector<8x128xf32> to vector<8x32xf32>
    %62 = arith.mulf %59, %46 : vector<8x32xf32>
    %63 = arith.mulf %58, %60 : vector<8x32xf32>
    %64 = arith.addf %62, %63 : vector<8x32xf32>
    %65 = math.tanh %64 : vector<8x32xf32>
    %66 = arith.mulf %61, %65 : vector<8x32xf32>
    %67 = vector.extract_strided_slice %10 {offsets = [24, 0], sizes = [8, 128], strides = [1, 1]} : vector<64x128xf32> to vector<8x128xf32>
    %cst_18 = arith.constant dense<0.000000e+00> : vector<8x128xf32>
    %68 = tpu.matmul %66, %6, %cst_18 {dimension_numbers = #tpu.dot_dimension_numbers<[1], [0], [0], [1], [0, 0, 1, 1], [], []>} : vector<8x32xf32>, vector<32x128xf32>, vector<8x128xf32> -> vector<8x128xf32>
    %69 = arith.addf %67, %68 : vector<8x128xf32>
    %70 = arith.negf %69 : vector<8x128xf32>
    %71 = math.exp %70 : vector<8x128xf32>
    %cst_19 = arith.constant 1.000000e+00 : f32
    %72 = vector.broadcast %cst_19 : f32 to vector<8x128xf32>
    %73 = arith.addf %72, %71 : vector<8x128xf32>
    %74 = arith.divf %72, %73 : vector<8x128xf32>
    %75 = math.tanh %69 : vector<8x128xf32>
    %76 = vector.extract_strided_slice %74 {offsets = [0, 0], sizes = [8, 32], strides = [1, 1]} : vector<8x128xf32> to vector<8x32xf32>
    %77 = vector.extract_strided_slice %74 {offsets = [0, 32], sizes = [8, 32], strides = [1, 1]} : vector<8x128xf32> to vector<8x32xf32>
    %78 = vector.extract_strided_slice %75 {offsets = [0, 64], sizes = [8, 32], strides = [1, 1]} : vector<8x128xf32> to vector<8x32xf32>
    %79 = vector.extract_strided_slice %74 {offsets = [0, 96], sizes = [8, 32], strides = [1, 1]} : vector<8x128xf32> to vector<8x32xf32>
    %80 = arith.mulf %77, %64 : vector<8x32xf32>
    %81 = arith.mulf %76, %78 : vector<8x32xf32>
    %82 = arith.addf %80, %81 : vector<8x32xf32>
    %83 = math.tanh %82 : vector<8x32xf32>
    %84 = arith.mulf %79, %83 : vector<8x32xf32>
    %85 = vector.extract_strided_slice %10 {offsets = [32, 0], sizes = [8, 128], strides = [1, 1]} : vector<64x128xf32> to vector<8x128xf32>
    %cst_20 = arith.constant dense<0.000000e+00> : vector<8x128xf32>
    %86 = tpu.matmul %84, %6, %cst_20 {dimension_numbers = #tpu.dot_dimension_numbers<[1], [0], [0], [1], [0, 0, 1, 1], [], []>} : vector<8x32xf32>, vector<32x128xf32>, vector<8x128xf32> -> vector<8x128xf32>
    %87 = arith.addf %85, %86 : vector<8x128xf32>
    %88 = arith.negf %87 : vector<8x128xf32>
    %89 = math.exp %88 : vector<8x128xf32>
    %cst_21 = arith.constant 1.000000e+00 : f32
    %90 = vector.broadcast %cst_21 : f32 to vector<8x128xf32>
    %91 = arith.addf %90, %89 : vector<8x128xf32>
    %92 = arith.divf %90, %91 : vector<8x128xf32>
    %93 = math.tanh %87 : vector<8x128xf32>
    %94 = vector.extract_strided_slice %92 {offsets = [0, 0], sizes = [8, 32], strides = [1, 1]} : vector<8x128xf32> to vector<8x32xf32>
    %95 = vector.extract_strided_slice %92 {offsets = [0, 32], sizes = [8, 32], strides = [1, 1]} : vector<8x128xf32> to vector<8x32xf32>
    %96 = vector.extract_strided_slice %93 {offsets = [0, 64], sizes = [8, 32], strides = [1, 1]} : vector<8x128xf32> to vector<8x32xf32>
    %97 = vector.extract_strided_slice %92 {offsets = [0, 96], sizes = [8, 32], strides = [1, 1]} : vector<8x128xf32> to vector<8x32xf32>
    %98 = arith.mulf %95, %82 : vector<8x32xf32>
    %99 = arith.mulf %94, %96 : vector<8x32xf32>
    %100 = arith.addf %98, %99 : vector<8x32xf32>
    %101 = math.tanh %100 : vector<8x32xf32>
    %102 = arith.mulf %97, %101 : vector<8x32xf32>
    %103 = vector.extract_strided_slice %10 {offsets = [40, 0], sizes = [8, 128], strides = [1, 1]} : vector<64x128xf32> to vector<8x128xf32>
    %cst_22 = arith.constant dense<0.000000e+00> : vector<8x128xf32>
    %104 = tpu.matmul %102, %6, %cst_22 {dimension_numbers = #tpu.dot_dimension_numbers<[1], [0], [0], [1], [0, 0, 1, 1], [], []>} : vector<8x32xf32>, vector<32x128xf32>, vector<8x128xf32> -> vector<8x128xf32>
    %105 = arith.addf %103, %104 : vector<8x128xf32>
    %106 = arith.negf %105 : vector<8x128xf32>
    %107 = math.exp %106 : vector<8x128xf32>
    %cst_23 = arith.constant 1.000000e+00 : f32
    %108 = vector.broadcast %cst_23 : f32 to vector<8x128xf32>
    %109 = arith.addf %108, %107 : vector<8x128xf32>
    %110 = arith.divf %108, %109 : vector<8x128xf32>
    %111 = math.tanh %105 : vector<8x128xf32>
    %112 = vector.extract_strided_slice %110 {offsets = [0, 0], sizes = [8, 32], strides = [1, 1]} : vector<8x128xf32> to vector<8x32xf32>
    %113 = vector.extract_strided_slice %110 {offsets = [0, 32], sizes = [8, 32], strides = [1, 1]} : vector<8x128xf32> to vector<8x32xf32>
    %114 = vector.extract_strided_slice %111 {offsets = [0, 64], sizes = [8, 32], strides = [1, 1]} : vector<8x128xf32> to vector<8x32xf32>
    %115 = vector.extract_strided_slice %110 {offsets = [0, 96], sizes = [8, 32], strides = [1, 1]} : vector<8x128xf32> to vector<8x32xf32>
    %116 = arith.mulf %113, %100 : vector<8x32xf32>
    %117 = arith.mulf %112, %114 : vector<8x32xf32>
    %118 = arith.addf %116, %117 : vector<8x32xf32>
    %119 = math.tanh %118 : vector<8x32xf32>
    %120 = arith.mulf %115, %119 : vector<8x32xf32>
    %121 = vector.extract_strided_slice %10 {offsets = [48, 0], sizes = [8, 128], strides = [1, 1]} : vector<64x128xf32> to vector<8x128xf32>
    %cst_24 = arith.constant dense<0.000000e+00> : vector<8x128xf32>
    %122 = tpu.matmul %120, %6, %cst_24 {dimension_numbers = #tpu.dot_dimension_numbers<[1], [0], [0], [1], [0, 0, 1, 1], [], []>} : vector<8x32xf32>, vector<32x128xf32>, vector<8x128xf32> -> vector<8x128xf32>
    %123 = arith.addf %121, %122 : vector<8x128xf32>
    %124 = arith.negf %123 : vector<8x128xf32>
    %125 = math.exp %124 : vector<8x128xf32>
    %cst_25 = arith.constant 1.000000e+00 : f32
    %126 = vector.broadcast %cst_25 : f32 to vector<8x128xf32>
    %127 = arith.addf %126, %125 : vector<8x128xf32>
    %128 = arith.divf %126, %127 : vector<8x128xf32>
    %129 = math.tanh %123 : vector<8x128xf32>
    %130 = vector.extract_strided_slice %128 {offsets = [0, 0], sizes = [8, 32], strides = [1, 1]} : vector<8x128xf32> to vector<8x32xf32>
    %131 = vector.extract_strided_slice %128 {offsets = [0, 32], sizes = [8, 32], strides = [1, 1]} : vector<8x128xf32> to vector<8x32xf32>
    %132 = vector.extract_strided_slice %129 {offsets = [0, 64], sizes = [8, 32], strides = [1, 1]} : vector<8x128xf32> to vector<8x32xf32>
    %133 = vector.extract_strided_slice %128 {offsets = [0, 96], sizes = [8, 32], strides = [1, 1]} : vector<8x128xf32> to vector<8x32xf32>
    %134 = arith.mulf %131, %118 : vector<8x32xf32>
    %135 = arith.mulf %130, %132 : vector<8x32xf32>
    %136 = arith.addf %134, %135 : vector<8x32xf32>
    %137 = math.tanh %136 : vector<8x32xf32>
    %138 = arith.mulf %133, %137 : vector<8x32xf32>
    %139 = vector.extract_strided_slice %10 {offsets = [56, 0], sizes = [8, 128], strides = [1, 1]} : vector<64x128xf32> to vector<8x128xf32>
    %cst_26 = arith.constant dense<0.000000e+00> : vector<8x128xf32>
    %140 = tpu.matmul %138, %6, %cst_26 {dimension_numbers = #tpu.dot_dimension_numbers<[1], [0], [0], [1], [0, 0, 1, 1], [], []>} : vector<8x32xf32>, vector<32x128xf32>, vector<8x128xf32> -> vector<8x128xf32>
    %141 = arith.addf %139, %140 : vector<8x128xf32>
    %142 = arith.negf %141 : vector<8x128xf32>
    %143 = math.exp %142 : vector<8x128xf32>
    %cst_27 = arith.constant 1.000000e+00 : f32
    %144 = vector.broadcast %cst_27 : f32 to vector<8x128xf32>
    %145 = arith.addf %144, %143 : vector<8x128xf32>
    %146 = arith.divf %144, %145 : vector<8x128xf32>
    %147 = math.tanh %141 : vector<8x128xf32>
    %148 = vector.extract_strided_slice %146 {offsets = [0, 0], sizes = [8, 32], strides = [1, 1]} : vector<8x128xf32> to vector<8x32xf32>
    %149 = vector.extract_strided_slice %146 {offsets = [0, 32], sizes = [8, 32], strides = [1, 1]} : vector<8x128xf32> to vector<8x32xf32>
    %150 = vector.extract_strided_slice %147 {offsets = [0, 64], sizes = [8, 32], strides = [1, 1]} : vector<8x128xf32> to vector<8x32xf32>
    %151 = vector.extract_strided_slice %146 {offsets = [0, 96], sizes = [8, 32], strides = [1, 1]} : vector<8x128xf32> to vector<8x32xf32>
    %152 = arith.mulf %149, %136 : vector<8x32xf32>
    %153 = arith.mulf %148, %150 : vector<8x32xf32>
    %154 = arith.addf %152, %153 : vector<8x32xf32>
    %155 = math.tanh %154 : vector<8x32xf32>
    %156 = arith.mulf %151, %155 : vector<8x32xf32>
    %157 = tpu.concatenate %30, %48, %66, %84, %102, %120, %138, %156 in 0 : vector<8x32xf32>, vector<8x32xf32>, vector<8x32xf32>, vector<8x32xf32>, vector<8x32xf32>, vector<8x32xf32>, vector<8x32xf32>, vector<8x32xf32> -> vector<64x32xf32>
    %c0_28 = arith.constant 0 : index
    %c0_29 = arith.constant 0 : index
    %158 = vector.load %arg6[%c0_28, %c0_29] : memref<32x128xf32, #tpu.memory_space<vmem>>, vector<32x128xf32>
    %c0_30 = arith.constant 0 : index
    %c0_31 = arith.constant 0 : index
    %159 = vector.load %arg7[%c0_30, %c0_31] : memref<32x128xf32, #tpu.memory_space<vmem>>, vector<32x128xf32>
    %c0_32 = arith.constant 0 : index
    %c0_33 = arith.constant 0 : index
    %160 = vector.load %arg8[%c0_32, %c0_33] : memref<1x128xf32, #tpu.memory_space<vmem>>, vector<1x128xf32>
    %cst_34 = arith.constant dense<0.000000e+00> : vector<64x128xf32>
    %161 = tpu.matmul %157, %158, %cst_34 {dimension_numbers = #tpu.dot_dimension_numbers<[1], [0], [0], [1], [0, 0, 1, 1], [], []>} : vector<64x32xf32>, vector<32x128xf32>, vector<64x128xf32> -> vector<64x128xf32>
    %162 = vector.broadcast %160 : vector<1x128xf32> to vector<64x128xf32>
    %163 = arith.addf %161, %162 : vector<64x128xf32>
    %cst_35 = arith.constant 0.000000e+00 : f32
    %164 = vector.broadcast %cst_35 : f32 to vector<8x32xf32>
    %cst_36 = arith.constant 0.000000e+00 : f32
    %165 = vector.broadcast %cst_36 : f32 to vector<8x32xf32>
    %166 = vector.extract_strided_slice %163 {offsets = [0, 0], sizes = [8, 128], strides = [1, 1]} : vector<64x128xf32> to vector<8x128xf32>
    %cst_37 = arith.constant dense<0.000000e+00> : vector<8x128xf32>
    %167 = tpu.matmul %164, %159, %cst_37 {dimension_numbers = #tpu.dot_dimension_numbers<[1], [0], [0], [1], [0, 0, 1, 1], [], []>} : vector<8x32xf32>, vector<32x128xf32>, vector<8x128xf32> -> vector<8x128xf32>
    %168 = arith.addf %166, %167 : vector<8x128xf32>
    %169 = arith.negf %168 : vector<8x128xf32>
    %170 = math.exp %169 : vector<8x128xf32>
    %cst_38 = arith.constant 1.000000e+00 : f32
    %171 = vector.broadcast %cst_38 : f32 to vector<8x128xf32>
    %172 = arith.addf %171, %170 : vector<8x128xf32>
    %173 = arith.divf %171, %172 : vector<8x128xf32>
    %174 = math.tanh %168 : vector<8x128xf32>
    %175 = vector.extract_strided_slice %173 {offsets = [0, 0], sizes = [8, 32], strides = [1, 1]} : vector<8x128xf32> to vector<8x32xf32>
    %176 = vector.extract_strided_slice %173 {offsets = [0, 32], sizes = [8, 32], strides = [1, 1]} : vector<8x128xf32> to vector<8x32xf32>
    %177 = vector.extract_strided_slice %174 {offsets = [0, 64], sizes = [8, 32], strides = [1, 1]} : vector<8x128xf32> to vector<8x32xf32>
    %178 = vector.extract_strided_slice %173 {offsets = [0, 96], sizes = [8, 32], strides = [1, 1]} : vector<8x128xf32> to vector<8x32xf32>
    %179 = arith.mulf %176, %165 : vector<8x32xf32>
    %180 = arith.mulf %175, %177 : vector<8x32xf32>
    %181 = arith.addf %179, %180 : vector<8x32xf32>
    %182 = math.tanh %181 : vector<8x32xf32>
    %183 = arith.mulf %178, %182 : vector<8x32xf32>
    %c0_i32 = arith.constant 0 : i32
    %184 = vector.broadcast %c0_i32 : i32 to vector<8x1xi32>
    %185 = arith.cmpi eq, %2, %184 : vector<8x1xi32>
    %186 = vector.shape_cast %185 : vector<8x1xi1> to vector<8x1xi1>
    %187 = vector.broadcast %186 : vector<8x1xi1> to vector<8x32xi1>
    %188 = arith.select %187, %183, %4 : vector<8x32xi1>, vector<8x32xf32>
    %189 = vector.extract_strided_slice %163 {offsets = [8, 0], sizes = [8, 128], strides = [1, 1]} : vector<64x128xf32> to vector<8x128xf32>
    %cst_39 = arith.constant dense<0.000000e+00> : vector<8x128xf32>
    %190 = tpu.matmul %183, %159, %cst_39 {dimension_numbers = #tpu.dot_dimension_numbers<[1], [0], [0], [1], [0, 0, 1, 1], [], []>} : vector<8x32xf32>, vector<32x128xf32>, vector<8x128xf32> -> vector<8x128xf32>
    %191 = arith.addf %189, %190 : vector<8x128xf32>
    %192 = arith.negf %191 : vector<8x128xf32>
    %193 = math.exp %192 : vector<8x128xf32>
    %cst_40 = arith.constant 1.000000e+00 : f32
    %194 = vector.broadcast %cst_40 : f32 to vector<8x128xf32>
    %195 = arith.addf %194, %193 : vector<8x128xf32>
    %196 = arith.divf %194, %195 : vector<8x128xf32>
    %197 = math.tanh %191 : vector<8x128xf32>
    %198 = vector.extract_strided_slice %196 {offsets = [0, 0], sizes = [8, 32], strides = [1, 1]} : vector<8x128xf32> to vector<8x32xf32>
    %199 = vector.extract_strided_slice %196 {offsets = [0, 32], sizes = [8, 32], strides = [1, 1]} : vector<8x128xf32> to vector<8x32xf32>
    %200 = vector.extract_strided_slice %197 {offsets = [0, 64], sizes = [8, 32], strides = [1, 1]} : vector<8x128xf32> to vector<8x32xf32>
    %201 = vector.extract_strided_slice %196 {offsets = [0, 96], sizes = [8, 32], strides = [1, 1]} : vector<8x128xf32> to vector<8x32xf32>
    %202 = arith.mulf %199, %181 : vector<8x32xf32>
    %203 = arith.mulf %198, %200 : vector<8x32xf32>
    %204 = arith.addf %202, %203 : vector<8x32xf32>
    %205 = math.tanh %204 : vector<8x32xf32>
    %206 = arith.mulf %201, %205 : vector<8x32xf32>
    %c1_i32_41 = arith.constant 1 : i32
    %207 = vector.broadcast %c1_i32_41 : i32 to vector<8x1xi32>
    %208 = arith.cmpi eq, %2, %207 : vector<8x1xi32>
    %209 = vector.shape_cast %208 : vector<8x1xi1> to vector<8x1xi1>
    %210 = vector.broadcast %209 : vector<8x1xi1> to vector<8x32xi1>
    %211 = arith.select %210, %206, %188 : vector<8x32xi1>, vector<8x32xf32>
    %212 = vector.extract_strided_slice %163 {offsets = [16, 0], sizes = [8, 128], strides = [1, 1]} : vector<64x128xf32> to vector<8x128xf32>
    %cst_42 = arith.constant dense<0.000000e+00> : vector<8x128xf32>
    %213 = tpu.matmul %206, %159, %cst_42 {dimension_numbers = #tpu.dot_dimension_numbers<[1], [0], [0], [1], [0, 0, 1, 1], [], []>} : vector<8x32xf32>, vector<32x128xf32>, vector<8x128xf32> -> vector<8x128xf32>
    %214 = arith.addf %212, %213 : vector<8x128xf32>
    %215 = arith.negf %214 : vector<8x128xf32>
    %216 = math.exp %215 : vector<8x128xf32>
    %cst_43 = arith.constant 1.000000e+00 : f32
    %217 = vector.broadcast %cst_43 : f32 to vector<8x128xf32>
    %218 = arith.addf %217, %216 : vector<8x128xf32>
    %219 = arith.divf %217, %218 : vector<8x128xf32>
    %220 = math.tanh %214 : vector<8x128xf32>
    %221 = vector.extract_strided_slice %219 {offsets = [0, 0], sizes = [8, 32], strides = [1, 1]} : vector<8x128xf32> to vector<8x32xf32>
    %222 = vector.extract_strided_slice %219 {offsets = [0, 32], sizes = [8, 32], strides = [1, 1]} : vector<8x128xf32> to vector<8x32xf32>
    %223 = vector.extract_strided_slice %220 {offsets = [0, 64], sizes = [8, 32], strides = [1, 1]} : vector<8x128xf32> to vector<8x32xf32>
    %224 = vector.extract_strided_slice %219 {offsets = [0, 96], sizes = [8, 32], strides = [1, 1]} : vector<8x128xf32> to vector<8x32xf32>
    %225 = arith.mulf %222, %204 : vector<8x32xf32>
    %226 = arith.mulf %221, %223 : vector<8x32xf32>
    %227 = arith.addf %225, %226 : vector<8x32xf32>
    %228 = math.tanh %227 : vector<8x32xf32>
    %229 = arith.mulf %224, %228 : vector<8x32xf32>
    %c2_i32 = arith.constant 2 : i32
    %230 = vector.broadcast %c2_i32 : i32 to vector<8x1xi32>
    %231 = arith.cmpi eq, %2, %230 : vector<8x1xi32>
    %232 = vector.shape_cast %231 : vector<8x1xi1> to vector<8x1xi1>
    %233 = vector.broadcast %232 : vector<8x1xi1> to vector<8x32xi1>
    %234 = arith.select %233, %229, %211 : vector<8x32xi1>, vector<8x32xf32>
    %235 = vector.extract_strided_slice %163 {offsets = [24, 0], sizes = [8, 128], strides = [1, 1]} : vector<64x128xf32> to vector<8x128xf32>
    %cst_44 = arith.constant dense<0.000000e+00> : vector<8x128xf32>
    %236 = tpu.matmul %229, %159, %cst_44 {dimension_numbers = #tpu.dot_dimension_numbers<[1], [0], [0], [1], [0, 0, 1, 1], [], []>} : vector<8x32xf32>, vector<32x128xf32>, vector<8x128xf32> -> vector<8x128xf32>
    %237 = arith.addf %235, %236 : vector<8x128xf32>
    %238 = arith.negf %237 : vector<8x128xf32>
    %239 = math.exp %238 : vector<8x128xf32>
    %cst_45 = arith.constant 1.000000e+00 : f32
    %240 = vector.broadcast %cst_45 : f32 to vector<8x128xf32>
    %241 = arith.addf %240, %239 : vector<8x128xf32>
    %242 = arith.divf %240, %241 : vector<8x128xf32>
    %243 = math.tanh %237 : vector<8x128xf32>
    %244 = vector.extract_strided_slice %242 {offsets = [0, 0], sizes = [8, 32], strides = [1, 1]} : vector<8x128xf32> to vector<8x32xf32>
    %245 = vector.extract_strided_slice %242 {offsets = [0, 32], sizes = [8, 32], strides = [1, 1]} : vector<8x128xf32> to vector<8x32xf32>
    %246 = vector.extract_strided_slice %243 {offsets = [0, 64], sizes = [8, 32], strides = [1, 1]} : vector<8x128xf32> to vector<8x32xf32>
    %247 = vector.extract_strided_slice %242 {offsets = [0, 96], sizes = [8, 32], strides = [1, 1]} : vector<8x128xf32> to vector<8x32xf32>
    %248 = arith.mulf %245, %227 : vector<8x32xf32>
    %249 = arith.mulf %244, %246 : vector<8x32xf32>
    %250 = arith.addf %248, %249 : vector<8x32xf32>
    %251 = math.tanh %250 : vector<8x32xf32>
    %252 = arith.mulf %247, %251 : vector<8x32xf32>
    %c3_i32 = arith.constant 3 : i32
    %253 = vector.broadcast %c3_i32 : i32 to vector<8x1xi32>
    %254 = arith.cmpi eq, %2, %253 : vector<8x1xi32>
    %255 = vector.shape_cast %254 : vector<8x1xi1> to vector<8x1xi1>
    %256 = vector.broadcast %255 : vector<8x1xi1> to vector<8x32xi1>
    %257 = arith.select %256, %252, %234 : vector<8x32xi1>, vector<8x32xf32>
    %258 = vector.extract_strided_slice %163 {offsets = [32, 0], sizes = [8, 128], strides = [1, 1]} : vector<64x128xf32> to vector<8x128xf32>
    %cst_46 = arith.constant dense<0.000000e+00> : vector<8x128xf32>
    %259 = tpu.matmul %252, %159, %cst_46 {dimension_numbers = #tpu.dot_dimension_numbers<[1], [0], [0], [1], [0, 0, 1, 1], [], []>} : vector<8x32xf32>, vector<32x128xf32>, vector<8x128xf32> -> vector<8x128xf32>
    %260 = arith.addf %258, %259 : vector<8x128xf32>
    %261 = arith.negf %260 : vector<8x128xf32>
    %262 = math.exp %261 : vector<8x128xf32>
    %cst_47 = arith.constant 1.000000e+00 : f32
    %263 = vector.broadcast %cst_47 : f32 to vector<8x128xf32>
    %264 = arith.addf %263, %262 : vector<8x128xf32>
    %265 = arith.divf %263, %264 : vector<8x128xf32>
    %266 = math.tanh %260 : vector<8x128xf32>
    %267 = vector.extract_strided_slice %265 {offsets = [0, 0], sizes = [8, 32], strides = [1, 1]} : vector<8x128xf32> to vector<8x32xf32>
    %268 = vector.extract_strided_slice %265 {offsets = [0, 32], sizes = [8, 32], strides = [1, 1]} : vector<8x128xf32> to vector<8x32xf32>
    %269 = vector.extract_strided_slice %266 {offsets = [0, 64], sizes = [8, 32], strides = [1, 1]} : vector<8x128xf32> to vector<8x32xf32>
    %270 = vector.extract_strided_slice %265 {offsets = [0, 96], sizes = [8, 32], strides = [1, 1]} : vector<8x128xf32> to vector<8x32xf32>
    %271 = arith.mulf %268, %250 : vector<8x32xf32>
    %272 = arith.mulf %267, %269 : vector<8x32xf32>
    %273 = arith.addf %271, %272 : vector<8x32xf32>
    %274 = math.tanh %273 : vector<8x32xf32>
    %275 = arith.mulf %270, %274 : vector<8x32xf32>
    %c4_i32 = arith.constant 4 : i32
    %276 = vector.broadcast %c4_i32 : i32 to vector<8x1xi32>
    %277 = arith.cmpi eq, %2, %276 : vector<8x1xi32>
    %278 = vector.shape_cast %277 : vector<8x1xi1> to vector<8x1xi1>
    %279 = vector.broadcast %278 : vector<8x1xi1> to vector<8x32xi1>
    %280 = arith.select %279, %275, %257 : vector<8x32xi1>, vector<8x32xf32>
    %281 = vector.extract_strided_slice %163 {offsets = [40, 0], sizes = [8, 128], strides = [1, 1]} : vector<64x128xf32> to vector<8x128xf32>
    %cst_48 = arith.constant dense<0.000000e+00> : vector<8x128xf32>
    %282 = tpu.matmul %275, %159, %cst_48 {dimension_numbers = #tpu.dot_dimension_numbers<[1], [0], [0], [1], [0, 0, 1, 1], [], []>} : vector<8x32xf32>, vector<32x128xf32>, vector<8x128xf32> -> vector<8x128xf32>
    %283 = arith.addf %281, %282 : vector<8x128xf32>
    %284 = arith.negf %283 : vector<8x128xf32>
    %285 = math.exp %284 : vector<8x128xf32>
    %cst_49 = arith.constant 1.000000e+00 : f32
    %286 = vector.broadcast %cst_49 : f32 to vector<8x128xf32>
    %287 = arith.addf %286, %285 : vector<8x128xf32>
    %288 = arith.divf %286, %287 : vector<8x128xf32>
    %289 = math.tanh %283 : vector<8x128xf32>
    %290 = vector.extract_strided_slice %288 {offsets = [0, 0], sizes = [8, 32], strides = [1, 1]} : vector<8x128xf32> to vector<8x32xf32>
    %291 = vector.extract_strided_slice %288 {offsets = [0, 32], sizes = [8, 32], strides = [1, 1]} : vector<8x128xf32> to vector<8x32xf32>
    %292 = vector.extract_strided_slice %289 {offsets = [0, 64], sizes = [8, 32], strides = [1, 1]} : vector<8x128xf32> to vector<8x32xf32>
    %293 = vector.extract_strided_slice %288 {offsets = [0, 96], sizes = [8, 32], strides = [1, 1]} : vector<8x128xf32> to vector<8x32xf32>
    %294 = arith.mulf %291, %273 : vector<8x32xf32>
    %295 = arith.mulf %290, %292 : vector<8x32xf32>
    %296 = arith.addf %294, %295 : vector<8x32xf32>
    %297 = math.tanh %296 : vector<8x32xf32>
    %298 = arith.mulf %293, %297 : vector<8x32xf32>
    %c5_i32 = arith.constant 5 : i32
    %299 = vector.broadcast %c5_i32 : i32 to vector<8x1xi32>
    %300 = arith.cmpi eq, %2, %299 : vector<8x1xi32>
    %301 = vector.shape_cast %300 : vector<8x1xi1> to vector<8x1xi1>
    %302 = vector.broadcast %301 : vector<8x1xi1> to vector<8x32xi1>
    %303 = arith.select %302, %298, %280 : vector<8x32xi1>, vector<8x32xf32>
    %304 = vector.extract_strided_slice %163 {offsets = [48, 0], sizes = [8, 128], strides = [1, 1]} : vector<64x128xf32> to vector<8x128xf32>
    %cst_50 = arith.constant dense<0.000000e+00> : vector<8x128xf32>
    %305 = tpu.matmul %298, %159, %cst_50 {dimension_numbers = #tpu.dot_dimension_numbers<[1], [0], [0], [1], [0, 0, 1, 1], [], []>} : vector<8x32xf32>, vector<32x128xf32>, vector<8x128xf32> -> vector<8x128xf32>
    %306 = arith.addf %304, %305 : vector<8x128xf32>
    %307 = arith.negf %306 : vector<8x128xf32>
    %308 = math.exp %307 : vector<8x128xf32>
    %cst_51 = arith.constant 1.000000e+00 : f32
    %309 = vector.broadcast %cst_51 : f32 to vector<8x128xf32>
    %310 = arith.addf %309, %308 : vector<8x128xf32>
    %311 = arith.divf %309, %310 : vector<8x128xf32>
    %312 = math.tanh %306 : vector<8x128xf32>
    %313 = vector.extract_strided_slice %311 {offsets = [0, 0], sizes = [8, 32], strides = [1, 1]} : vector<8x128xf32> to vector<8x32xf32>
    %314 = vector.extract_strided_slice %311 {offsets = [0, 32], sizes = [8, 32], strides = [1, 1]} : vector<8x128xf32> to vector<8x32xf32>
    %315 = vector.extract_strided_slice %312 {offsets = [0, 64], sizes = [8, 32], strides = [1, 1]} : vector<8x128xf32> to vector<8x32xf32>
    %316 = vector.extract_strided_slice %311 {offsets = [0, 96], sizes = [8, 32], strides = [1, 1]} : vector<8x128xf32> to vector<8x32xf32>
    %317 = arith.mulf %314, %296 : vector<8x32xf32>
    %318 = arith.mulf %313, %315 : vector<8x32xf32>
    %319 = arith.addf %317, %318 : vector<8x32xf32>
    %320 = math.tanh %319 : vector<8x32xf32>
    %321 = arith.mulf %316, %320 : vector<8x32xf32>
    %c6_i32 = arith.constant 6 : i32
    %322 = vector.broadcast %c6_i32 : i32 to vector<8x1xi32>
    %323 = arith.cmpi eq, %2, %322 : vector<8x1xi32>
    %324 = vector.shape_cast %323 : vector<8x1xi1> to vector<8x1xi1>
    %325 = vector.broadcast %324 : vector<8x1xi1> to vector<8x32xi1>
    %326 = arith.select %325, %321, %303 : vector<8x32xi1>, vector<8x32xf32>
    %327 = vector.extract_strided_slice %163 {offsets = [56, 0], sizes = [8, 128], strides = [1, 1]} : vector<64x128xf32> to vector<8x128xf32>
    %cst_52 = arith.constant dense<0.000000e+00> : vector<8x128xf32>
    %328 = tpu.matmul %321, %159, %cst_52 {dimension_numbers = #tpu.dot_dimension_numbers<[1], [0], [0], [1], [0, 0, 1, 1], [], []>} : vector<8x32xf32>, vector<32x128xf32>, vector<8x128xf32> -> vector<8x128xf32>
    %329 = arith.addf %327, %328 : vector<8x128xf32>
    %330 = arith.negf %329 : vector<8x128xf32>
    %331 = math.exp %330 : vector<8x128xf32>
    %cst_53 = arith.constant 1.000000e+00 : f32
    %332 = vector.broadcast %cst_53 : f32 to vector<8x128xf32>
    %333 = arith.addf %332, %331 : vector<8x128xf32>
    %334 = arith.divf %332, %333 : vector<8x128xf32>
    %335 = math.tanh %329 : vector<8x128xf32>
    %336 = vector.extract_strided_slice %334 {offsets = [0, 0], sizes = [8, 32], strides = [1, 1]} : vector<8x128xf32> to vector<8x32xf32>
    %337 = vector.extract_strided_slice %334 {offsets = [0, 32], sizes = [8, 32], strides = [1, 1]} : vector<8x128xf32> to vector<8x32xf32>
    %338 = vector.extract_strided_slice %335 {offsets = [0, 64], sizes = [8, 32], strides = [1, 1]} : vector<8x128xf32> to vector<8x32xf32>
    %339 = vector.extract_strided_slice %334 {offsets = [0, 96], sizes = [8, 32], strides = [1, 1]} : vector<8x128xf32> to vector<8x32xf32>
    %340 = arith.mulf %337, %319 : vector<8x32xf32>
    %341 = arith.mulf %336, %338 : vector<8x32xf32>
    %342 = arith.addf %340, %341 : vector<8x32xf32>
    %343 = math.tanh %342 : vector<8x32xf32>
    %344 = arith.mulf %339, %343 : vector<8x32xf32>
    %c7_i32 = arith.constant 7 : i32
    %345 = vector.broadcast %c7_i32 : i32 to vector<8x1xi32>
    %346 = arith.cmpi eq, %2, %345 : vector<8x1xi32>
    %347 = vector.shape_cast %346 : vector<8x1xi1> to vector<8x1xi1>
    %348 = vector.broadcast %347 : vector<8x1xi1> to vector<8x32xi1>
    %349 = arith.select %348, %344, %326 : vector<8x32xi1>, vector<8x32xf32>
    %c0_54 = arith.constant 0 : index
    %c0_55 = arith.constant 0 : index
    %350 = vector.load %arg9[%c0_54, %c0_55] : memref<8x32xf32, #tpu.memory_space<vmem>>, vector<8x32xf32>
    tpu.vector_store %arg9[%c0_54, %c0_55], %349 {strides = array<i32>} : memref<8x32xf32, #tpu.memory_space<vmem>>, vector<8x32xf32>,
    return
  }
  func.func @transform_0(%arg0: i32) -> (i32, i32) {
    %c0_i32 = arith.constant 0 : i32
    %c0_i32_0 = arith.constant 0 : i32
    %c0_i32_1 = arith.constant 0 : i32
    return %c0_i32, %c0_i32_0 : i32, i32
  }
  func.func @transform_1(%arg0: i32) -> (i32, i32) {
    %c0_i32 = arith.constant 0 : i32
    %c0_i32_0 = arith.constant 0 : i32
    %c0_i32_1 = arith.constant 0 : i32
    return %c0_i32, %c0_i32_0 : i32, i32
  }
  func.func @transform_2(%arg0: i32) -> (i32, i32) {
    %c0_i32 = arith.constant 0 : i32
    %c0_i32_0 = arith.constant 0 : i32
    %c0_i32_1 = arith.constant 0 : i32
    return %c0_i32, %c0_i32_0 : i32, i32
  }
  func.func @transform_3(%arg0: i32) -> (i32, i32) {
    %c0_i32 = arith.constant 0 : i32
    %c0_i32_0 = arith.constant 0 : i32
    %c0_i32_1 = arith.constant 0 : i32
    return %c0_i32, %c0_i32_0 : i32, i32
  }
  func.func @transform_4(%arg0: i32) -> (i32, i32) {
    %c0_i32 = arith.constant 0 : i32
    %c0_i32_0 = arith.constant 0 : i32
    %c0_i32_1 = arith.constant 0 : i32
    return %c0_i32, %c0_i32_0 : i32, i32
  }
  func.func @transform_5(%arg0: i32) -> (i32, i32) {
    %c0_i32 = arith.constant 0 : i32
    %c0_i32_0 = arith.constant 0 : i32
    %c0_i32_1 = arith.constant 0 : i32
    return %c0_i32, %c0_i32_0 : i32, i32
  }
  func.func @transform_6(%arg0: i32) -> (i32, i32) {
    %c0_i32 = arith.constant 0 : i32
    %c0_i32_0 = arith.constant 0 : i32
    %c0_i32_1 = arith.constant 0 : i32
    return %c0_i32, %c0_i32_0 : i32, i32
  }
  func.func @transform_7(%arg0: i32) -> (i32, i32) {
    %c0_i32 = arith.constant 0 : i32
    %c0_i32_0 = arith.constant 0 : i32
    %c0_i32_1 = arith.constant 0 : i32
    return %c0_i32, %c0_i32_0 : i32, i32
  }
  func.func @transform_8(%arg0: i32) -> (i32, i32) {
    %c0_i32 = arith.constant 0 : i32
    %c0_i32_0 = arith.constant 0 : i32
    %c0_i32_1 = arith.constant 0 : i32
    return %c0_i32, %c0_i32_0 : i32, i32
  }
}

</mosaic_0001>

<llo_original>
// kernel: tpu_custom_call.1
$region0: #{tpu_custom_call.1}
  #allocation0 [shape = 'u32[]', space=smem, size = 0x4, offset = 0x4, fixed_abs, tag = 'smem constant byte address 0x4 - core index']
  #allocation1 [shape = 'u32[72,128]{1,0:T(1,128)}', space=vmem, size = 0x9000, scoped, tag = 'internal scratch']
  %s0 = inlined_call_operand.vmem [shape: s32[8,1], index: 0, kind: input, shape index: {}]
  %s1 = inlined_call_operand.vmem [shape: f32[64,8], index: 1, kind: input, shape index: {}]
  %s2 = inlined_call_operand.vmem [shape: f32[8,128], index: 2, kind: input, shape index: {}]
  %s3 = inlined_call_operand.vmem [shape: f32[32,128], index: 3, kind: input, shape index: {}]
  %s4 = inlined_call_operand.vmem [shape: f32[1,128], index: 4, kind: input, shape index: {}]
  %s5 = inlined_call_operand.vmem [shape: f32[32,128], index: 5, kind: input, shape index: {}]
  %s6 = inlined_call_operand.hbm [shape: f32[32,128], index: 6, kind: input, shape index: {}]
  %s7 = inlined_call_operand.vmem [shape: f32[1,128], index: 7, kind: input, shape index: {}]
  %s8 = inlined_call_operand.hbm [shape: f32[8,32], index: 8, kind: output, shape index: {}]
  %s9 = sld [smem:[#allocation0]]
  $region46: #{tpu_custom_call.1} parent=0
    _
  %s11 = ssub.s32 1, %s9
  %s12 = scalar_select 0, %s11, %s9
  $region1: #{tpu_custom_call.1} parent=0
    #allocation2 [shape = 'u8[16384]{0}', space=vmem, size = 0x4000, scoped, tag = 'input window, operand 6, single buffered']
    #allocation3 [shape = 's32[1]{0}', space=sflag, size = 0x4, scoped, tag = 'scoped memory for tpu_custom_call.1']
    #allocation4 [shape = 's32[1]{0}', space=sflag, size = 0x4, scoped, tag = 'scoped memory for tpu_custom_call.1']
    #allocation5 [shape = 'u8[4096]{0}', space=vmem, size = 0x1000, scoped, tag = 'output window, operand 0, single buffered']
    %13 = vsyncpa [#allocation3], 0
    %14 = vsyncpa [#allocation4], 0
    // Predicated region
    $region2: #{tpu_custom_call.1} parent=1 // pred_check
      _
    $region3: #{tpu_custom_call.1} parent=1 // pred_check_branch
      %16 = sbr.rel (0) target = $region5
    $region4: #{tpu_custom_call.1} parent=1 // pred_region
      _
    $region5: #{tpu_custom_call.1} parent=1 // pred_fallthru
      _
    // Predicated region
    $region6: #{tpu_custom_call.1} parent=1 // pred_check
      _
    $region7: #{tpu_custom_call.1} parent=1 // pred_check_branch
      %18 = sbr.rel (0) target = $region9
    $region8: #{tpu_custom_call.1} parent=1 // pred_region
      _
    $region9: #{tpu_custom_call.1} parent=1 // pred_fallthru
      _
    // Predicated region
    $region10: #{tpu_custom_call.1} parent=1 // pred_check
      _
    $region11: #{tpu_custom_call.1} parent=1 // pred_check_branch
      %20 = sbr.rel (0) target = $region13
    $region12: #{tpu_custom_call.1} parent=1 // pred_region
      _
    $region13: #{tpu_custom_call.1} parent=1 // pred_fallthru
      _
    // Predicated region
    $region14: #{tpu_custom_call.1} parent=1 // pred_check
      _
    $region15: #{tpu_custom_call.1} parent=1 // pred_check_branch
      %22 = sbr.rel (0) target = $region17
    $region16: #{tpu_custom_call.1} parent=1 // pred_region
      _
    $region17: #{tpu_custom_call.1} parent=1 // pred_fallthru
      _
    // Predicated region
    $region18: #{tpu_custom_call.1} parent=1 // pred_check
      _
    $region19: #{tpu_custom_call.1} parent=1 // pred_check_branch
      %24 = sbr.rel (0) target = $region21
    $region20: #{tpu_custom_call.1} parent=1 // pred_region
      _
    $region21: #{tpu_custom_call.1} parent=1 // pred_fallthru
      _
    // Predicated region
    $region22: #{tpu_custom_call.1} parent=1 // pred_check
      _
    $region23: #{tpu_custom_call.1} parent=1 // pred_check_branch
      %26 = sbr.rel (0) target = $region25
    $region24: #{tpu_custom_call.1} parent=1 // pred_region
      _
    $region25: #{tpu_custom_call.1} parent=1 // pred_fallthru
      _
    // Predicated region
    $region26: #{tpu_custom_call.1} parent=1 // pred_check
      _
    $region27: #{tpu_custom_call.1} parent=1 // pred_check_branch
      %28 = sbr.rel (0) target = $region29
    $region28: #{tpu_custom_call.1} parent=1 // pred_region
      %30 = vsyncadd [#allocation3], 0
      %s31 = sshll.u32 %s6, 4
      %s32 = int_to_ptr.hbm [resolvable:$true] %s31
      %s33 = sshll.u32 [#allocation2], 4
      %s34 = int_to_ptr.vmem [resolvable:$true] %s33
      %39 = dma.hbm_to_vmem [thread:$0]  %s32, 512, %s34, [#allocation3], 128, 128, 8
    $region29: #{tpu_custom_call.1} parent=1 // pred_fallthru
      _
    // Predicated region
    $region30: #{tpu_custom_call.1} parent=1 // pred_check
      _
    $region31: #{tpu_custom_call.1} parent=1 // pred_check_branch
      %41 = sbr.rel (0) target = $region33
    $region32: #{tpu_custom_call.1} parent=1 // pred_region
      _
    $region33: #{tpu_custom_call.1} parent=1 // pred_fallthru
      _
    // Predicated region
    $region34: #{tpu_custom_call.1} parent=1 // pred_check
      _
    $region35: #{tpu_custom_call.1} parent=1 // pred_check_branch
      %43 = sbr.rel (0) target = $region37
    $region36: #{tpu_custom_call.1} parent=1 // pred_region
      %45 = dma.done [#allocation3], 512
    $region37: #{tpu_custom_call.1} parent=1 // pred_fallthru
      _
    %v46 = vld [vmem:[%s0] sm:$0xff]
    %v47 = vsub.s32 %v46, 1
    %v48 = vld [vmem:[%s1] sm:$0xff]
    %v49 = vld [vmem:[%s1 + $0x8] sm:$0xff]
    %v50 = vld [vmem:[%s1 + $0x10] sm:$0xff]
    %v51 = vld [vmem:[%s1 + $0x18] sm:$0xff]
    %v52 = vld [vmem:[%s1 + $0x20] sm:$0xff]
    %v53 = vld [vmem:[%s1 + $0x28] sm:$0xff]
    %v54 = vld [vmem:[%s1 + $0x30] sm:$0xff]
    %v55 = vld [vmem:[%s1 + $0x38] sm:$0xff]
    %v56 = vld [vmem:[%s2] sm:$0xff]
    %v57 = vld [vmem:[%s3] sm:$0xff]
    %v58 = vld [vmem:[%s3 + $0x8] sm:$0xff]
    %v59 = vld [vmem:[%s3 + $0x10] sm:$0xff]
    %v60 = vld [vmem:[%s3 + $0x18] sm:$0xff]
    %v61 = vld [vmem:[%s4] sm:$0x1]
    %v63 = vperm.slane %v61, 0
    %vm65 = vcmask 64512
    %v67 = vsel %vm65, %v48, 0
    %v70 = vsel %vm65, %v49, 0
    %v73 = vsel %vm65, %v50, 0
    %v76 = vsel %vm65, %v51, 0
    %v79 = vsel %vm65, %v52, 0
    %v82 = vsel %vm65, %v53, 0
    %v85 = vsel %vm65, %v54, 0
    %v88 = vsel %vm65, %v55, 0
    %90 = vmatpush.msra.mxu0 0.0
    %91 = vmatpush.msra.mxu0 0.0
    %92 = vmatpush.msra.mxu0 0.0
    %93 = vmatpush.msra.mxu0 0.0
    %94 = vmatpush.msra.mxu0 0.0
    %95 = vmatpush.msra.mxu0 0.0
    %96 = vmatpush.msra.mxu0 0.0
    %97 = vmatpush.msra.mxu0 0.0
    %98 = vmatpush.msra.mxu0 0.0
    %99 = vmatpush.msra.mxu0 0.0
    %100 = vmatpush.msra.mxu0 0.0
    %101 = vmatpush.msra.mxu0 0.0
    %102 = vmatpush.msra.mxu0 0.0
    %103 = vmatpush.msra.mxu0 0.0
    %104 = vmatpush.msra.mxu0 0.0
    %105 = vmatpush.msra.mxu0 %v56
    %106 = vmatmul.f32.gmra.mxu0 %v67
    %v107 = vpop.f32.mrf.mxu0
    %v108 = vadd.f32 %v63, %v107
    %109 = vmatmul.f32.gmra.mxu0 %v70
    %v110 = vpop.f32.mrf.mxu0
    %v111 = vadd.f32 %v63, %v110
    %112 = vmatmul.f32.gmra.mxu0 %v73
    %v113 = vpop.f32.mrf.mxu0
    %v114 = vadd.f32 %v63, %v113
    %115 = vmatmul.f32.gmra.mxu0 %v76
    %v116 = vpop.f32.mrf.mxu0
    %v117 = vadd.f32 %v63, %v116
    %118 = vmatmul.f32.gmra.mxu0 %v79
    %v119 = vpop.f32.mrf.mxu0
    %v120 = vadd.f32 %v63, %v119
    %121 = vmatmul.f32.gmra.mxu0 %v82
    %v122 = vpop.f32.mrf.mxu0
    %v123 = vadd.f32 %v63, %v122
    %124 = vmatmul.f32.gmra.mxu0 %v85
    %v125 = vpop.f32.mrf.mxu0
    %v126 = vadd.f32 %v63, %v125
    %127 = vmatmul.f32.gmra.mxu0 %v88
    %v128 = vpop.f32.mrf.mxu0
    %v129 = vadd.f32 %v63, %v128
    %130 = vdwg.mxu0
    %vm131 = vcmask 261120
    %v133 = vsel %vm131, 0.0, 0
    %135 = vmatpush.msra.mxu0 0.0
    %136 = vmatpush.msra.mxu0 0.0
    %137 = vmatpush.msra.mxu0 0.0
    %138 = vmatpush.msra.mxu0 0.0
    %139 = vmatpush.msra.mxu0 0.0
    %140 = vmatpush.msra.mxu0 0.0
    %141 = vmatpush.msra.mxu0 0.0
    %142 = vmatpush.msra.mxu0 0.0
    %143 = vmatpush.msra.mxu0 0.0
    %144 = vmatpush.msra.mxu0 0.0
    %145 = vmatpush.msra.mxu0 0.0
    %146 = vmatpush.msra.mxu0 0.0
    %147 = vmatpush.msra.mxu0 %v60
    %148 = vmatpush.msra.mxu0 %v59
    %149 = vmatpush.msra.mxu0 %v58
    %150 = vmatpush.msra.mxu0 %v57
    %151 = vmatmul.f32.gmra.mxu0 %v133
    %v152 = vpop.f32.mrf.mxu0
    %v153 = vadd.f32 0.0, %v152
    %154 = vdwg.mxu0
    %v155 = vadd.f32 %v108, %v153
    %v156 = vxor.u32 %v155, 2147483648
    %v157 = vmul.f32 %v156, 1.442695
    %v158 = vpow.pop %v157
    %v159 = vadd.f32 %v158, 1.0
    %v160 = vrcp.pop %v159
    %v161 = vmul.f32 %v159, %v160
    %v162 = vsub.f32 1.0, %v161
    %v163 = vmul.f32 %v160, %v162
    %v164 = vadd.f32 %v160, %v163
    %vm165 = vweird.f32 %v159
    %vm166 = vweird.f32 %v160
    %vm167 = vmor %vm165, %vm166
    %v168 = vsel %vm167, %v160, %v164
    %v169 = vand.u32 2147483647, %v159
    %vm170 = vcmp.eq.f32.partialorder %v169, 8.507059e+37
    %v171 = vand.u32 %v159, 2147483648
    %v172 = vor.u32 1.1754944e-38, %v171
    %v173 = vsel %vm170, %v172, %v168
    %v174 = vmul.f32 1.0, %v173
    %v175 = vtanh.pop %v155
    %v176 = vmul.f32 %v174, 0.0
    %178 = vrot.lane.b32.xlu0 %v175, 64
    %v179 = vpop.permute.xlu0 %178
    %v181 = vmul.f32 %v174, %v179
    %183 = vrot.lane.b32.xlu0 %v181, 32
    %v184 = vpop.permute.xlu0 %183
    %v186 = vadd.f32 %v176, %v184
    %v187 = vtanh.pop %v186
    %189 = vrot.lane.b32.xlu0 %v187, 64
    %v190 = vpop.permute.xlu0 %189
    %v192 = vmul.f32 %v174, %v190
    %194 = vrot.lane.b32.xlu0 %v192, 32
    %v195 = vpop.permute.xlu0 %194
    %v196 = vsel %vm131, %v195, 0
    %198 = vmatpush.msra.mxu0 0.0
    %199 = vmatpush.msra.mxu0 0.0
    %200 = vmatpush.msra.mxu0 0.0
    %201 = vmatpush.msra.mxu0 0.0
    %202 = vmatpush.msra.mxu0 0.0
    %203 = vmatpush.msra.mxu0 0.0
    %204 = vmatpush.msra.mxu0 0.0
    %205 = vmatpush.msra.mxu0 0.0
    %206 = vmatpush.msra.mxu0 0.0
    %207 = vmatpush.msra.mxu0 0.0
    %208 = vmatpush.msra.mxu0 0.0
    %209 = vmatpush.msra.mxu0 0.0
    %210 = vmatpush.msra.mxu0 %v60
    %211 = vmatpush.msra.mxu0 %v59
    %212 = vmatpush.msra.mxu0 %v58
    %213 = vmatpush.msra.mxu0 %v57
    %214 = vmatmul.f32.gmra.mxu0 %v196
    %v215 = vpop.f32.mrf.mxu0
    %v216 = vadd.f32 0.0, %v215
    %217 = vdwg.mxu0
    %v218 = vadd.f32 %v111, %v216
    %v219 = vxor.u32 %v218, 2147483648
    %v220 = vmul.f32 %v219, 1.442695
    %v221 = vpow.pop %v220
    %v222 = vadd.f32 %v221, 1.0
    %v223 = vrcp.pop %v222
    %v224 = vmul.f32 %v222, %v223
    %v225 = vsub.f32 1.0, %v224
    %v226 = vmul.f32 %v223, %v225
    %v227 = vadd.f32 %v223, %v226
    %vm228 = vweird.f32 %v222
    %vm229 = vweird.f32 %v223
    %vm230 = vmor %vm228, %vm229
    %v231 = vsel %vm230, %v223, %v227
    %v232 = vand.u32 2147483647, %v222
    %vm233 = vcmp.eq.f32.partialorder %v232, 8.507059e+37
    %v234 = vand.u32 %v222, 2147483648
    %v235 = vor.u32 1.1754944e-38, %v234
    %v236 = vsel %vm233, %v235, %v231
    %v237 = vmul.f32 1.0, %v236
    %v238 = vtanh.pop %v218
    %v239 = vmul.f32 %v237, %v186
    %241 = vrot.lane.b32.xlu0 %v238, 64
    %v242 = vpop.permute.xlu0 %241
    %v244 = vmul.f32 %v237, %v242
    %246 = vrot.lane.b32.xlu0 %v244, 32
    %v247 = vpop.permute.xlu0 %246
    %v249 = vadd.f32 %v239, %v247
    %v250 = vtanh.pop %v249
    %252 = vrot.lane.b32.xlu0 %v250, 64
    %v253 = vpop.permute.xlu0 %252
    %v255 = vmul.f32 %v237, %v253
    %257 = vrot.lane.b32.xlu0 %v255, 32
    %v258 = vpop.permute.xlu0 %257
    %v259 = vsel %vm131, %v258, 0
    %261 = vmatpush.msra.mxu0 0.0
    %262 = vmatpush.msra.mxu0 0.0
    %263 = vmatpush.msra.mxu0 0.0
    %264 = vmatpush.msra.mxu0 0.0
    %265 = vmatpush.msra.mxu0 0.0
    %266 = vmatpush.msra.mxu0 0.0
    %267 = vmatpush.msra.mxu0 0.0
    %268 = vmatpush.msra.mxu0 0.0
    %269 = vmatpush.msra.mxu0 0.0
    %270 = vmatpush.msra.mxu0 0.0
    %271 = vmatpush.msra.mxu0 0.0
    %272 = vmatpush.msra.mxu0 0.0
    %273 = vmatpush.msra.mxu0 %v60
    %274 = vmatpush.msra.mxu0 %v59
    %275 = vmatpush.msra.mxu0 %v58
    %276 = vmatpush.msra.mxu0 %v57
    %277 = vmatmul.f32.gmra.mxu0 %v259
    %v278 = vpop.f32.mrf.mxu0
    %v279 = vadd.f32 0.0, %v278
    %280 = vdwg.mxu0
    %v281 = vadd.f32 %v114, %v279
    %v282 = vxor.u32 %v281, 2147483648
    %v283 = vmul.f32 %v282, 1.442695
    %v284 = vpow.pop %v283
    %v285 = vadd.f32 %v284, 1.0
    %v286 = vrcp.pop %v285
    %v287 = vmul.f32 %v285, %v286
    %v288 = vsub.f32 1.0, %v287
    %v289 = vmul.f32 %v286, %v288
    %v290 = vadd.f32 %v286, %v289
    %vm291 = vweird.f32 %v285
    %vm292 = vweird.f32 %v286
    %vm293 = vmor %vm291, %vm292
    %v294 = vsel %vm293, %v286, %v290
    %v295 = vand.u32 2147483647, %v285
    %vm296 = vcmp.eq.f32.partialorder %v295, 8.507059e+37
    %v297 = vand.u32 %v285, 2147483648
    %v298 = vor.u32 1.1754944e-38, %v297
    %v299 = vsel %vm296, %v298, %v294
    %v300 = vmul.f32 1.0, %v299
    %v301 = vtanh.pop %v281
    %v302 = vmul.f32 %v300, %v249
    %304 = vrot.lane.b32.xlu0 %v301, 64
    %v305 = vpop.permute.xlu0 %304
    %v307 = vmul.f32 %v300, %v305
    %309 = vrot.lane.b32.xlu0 %v307, 32
    %v310 = vpop.permute.xlu0 %309
    %v312 = vadd.f32 %v302, %v310
    %v313 = vtanh.pop %v312
    %315 = vrot.lane.b32.xlu0 %v313, 64
    %v316 = vpop.permute.xlu0 %315
    %v318 = vmul.f32 %v300, %v316
    %320 = vrot.lane.b32.xlu0 %v318, 32
    %v321 = vpop.permute.xlu0 %320
    %v322 = vsel %vm131, %v321, 0
    %324 = vmatpush.msra.mxu0 0.0
    %325 = vmatpush.msra.mxu0 0.0
    %326 = vmatpush.msra.mxu0 0.0
    %327 = vmatpush.msra.mxu0 0.0
    %328 = vmatpush.msra.mxu0 0.0
    %329 = vmatpush.msra.mxu0 0.0
    %330 = vmatpush.msra.mxu0 0.0
    %331 = vmatpush.msra.mxu0 0.0
    %332 = vmatpush.msra.mxu0 0.0
    %333 = vmatpush.msra.mxu0 0.0
    %334 = vmatpush.msra.mxu0 0.0
    %335 = vmatpush.msra.mxu0 0.0
    %336 = vmatpush.msra.mxu0 %v60
    %337 = vmatpush.msra.mxu0 %v59
    %338 = vmatpush.msra.mxu0 %v58
    %339 = vmatpush.msra.mxu0 %v57
    %340 = vmatmul.f32.gmra.mxu0 %v322
    %v341 = vpop.f32.mrf.mxu0
    %v342 = vadd.f32 0.0, %v341
    %343 = vdwg.mxu0
    %v344 = vadd.f32 %v117, %v342
    %v345 = vxor.u32 %v344, 2147483648
    %v346 = vmul.f32 %v345, 1.442695
    %v347 = vpow.pop %v346
    %v348 = vadd.f32 %v347, 1.0
    %v349 = vrcp.pop %v348
    %v350 = vmul.f32 %v348, %v349
    %v351 = vsub.f32 1.0, %v350
    %v352 = vmul.f32 %v349, %v351
    %v353 = vadd.f32 %v349, %v352
    %vm354 = vweird.f32 %v348
    %vm355 = vweird.f32 %v349
    %vm356 = vmor %vm354, %vm355
    %v357 = vsel %vm356, %v349, %v353
    %v358 = vand.u32 2147483647, %v348
    %vm359 = vcmp.eq.f32.partialorder %v358, 8.507059e+37
    %v360 = vand.u32 %v348, 2147483648
    %v361 = vor.u32 1.1754944e-38, %v360
    %v362 = vsel %vm359, %v361, %v357
    %v363 = vmul.f32 1.0, %v362
    %v364 = vtanh.pop %v344
    %v365 = vmul.f32 %v363, %v312
    %367 = vrot.lane.b32.xlu0 %v364, 64
    %v368 = vpop.permute.xlu0 %367
    %v370 = vmul.f32 %v363, %v368
    %372 = vrot.lane.b32.xlu0 %v370, 32
    %v373 = vpop.permute.xlu0 %372
    %v375 = vadd.f32 %v365, %v373
    %v376 = vtanh.pop %v375
    %378 = vrot.lane.b32.xlu0 %v376, 64
    %v379 = vpop.permute.xlu0 %378
    %v381 = vmul.f32 %v363, %v379
    %383 = vrot.lane.b32.xlu0 %v381, 32
    %v384 = vpop.permute.xlu0 %383
    %v385 = vsel %vm131, %v384, 0
    %387 = vmatpush.msra.mxu0 0.0
    %388 = vmatpush.msra.mxu0 0.0
    %389 = vmatpush.msra.mxu0 0.0
    %390 = vmatpush.msra.mxu0 0.0
    %391 = vmatpush.msra.mxu0 0.0
    %392 = vmatpush.msra.mxu0 0.0
    %393 = vmatpush.msra.mxu0 0.0
    %394 = vmatpush.msra.mxu0 0.0
    %395 = vmatpush.msra.mxu0 0.0
    %396 = vmatpush.msra.mxu0 0.0
    %397 = vmatpush.msra.mxu0 0.0
    %398 = vmatpush.msra.mxu0 0.0
    %399 = vmatpush.msra.mxu0 %v60
    %400 = vmatpush.msra.mxu0 %v59
    %401 = vmatpush.msra.mxu0 %v58
    %402 = vmatpush.msra.mxu0 %v57
    %403 = vmatmul.f32.gmra.mxu0 %v385
    %v404 = vpop.f32.mrf.mxu0
    %v405 = vadd.f32 0.0, %v404
    %406 = vdwg.mxu0
    %v407 = vadd.f32 %v120, %v405
    %v408 = vxor.u32 %v407, 2147483648
    %v409 = vmul.f32 %v408, 1.442695
    %v410 = vpow.pop %v409
    %v411 = vadd.f32 %v410, 1.0
    %v412 = vrcp.pop %v411
    %v413 = vmul.f32 %v411, %v412
    %v414 = vsub.f32 1.0, %v413
    %v415 = vmul.f32 %v412, %v414
    %v416 = vadd.f32 %v412, %v415
    %vm417 = vweird.f32 %v411
    %vm418 = vweird.f32 %v412
    %vm419 = vmor %vm417, %vm418
    %v420 = vsel %vm419, %v412, %v416
    %v421 = vand.u32 2147483647, %v411
    %vm422 = vcmp.eq.f32.partialorder %v421, 8.507059e+37
    %v423 = vand.u32 %v411, 2147483648
    %v424 = vor.u32 1.1754944e-38, %v423
    %v425 = vsel %vm422, %v424, %v420
    %v426 = vmul.f32 1.0, %v425
    %v427 = vtanh.pop %v407
    %v428 = vmul.f32 %v426, %v375
    %430 = vrot.lane.b32.xlu0 %v427, 64
    %v431 = vpop.permute.xlu0 %430
    %v433 = vmul.f32 %v426, %v431
    %435 = vrot.lane.b32.xlu0 %v433, 32
    %v436 = vpop.permute.xlu0 %435
    %v438 = vadd.f32 %v428, %v436
    %v439 = vtanh.pop %v438
    %441 = vrot.lane.b32.xlu0 %v439, 64
    %v442 = vpop.permute.xlu0 %441
    %v444 = vmul.f32 %v426, %v442
    %446 = vrot.lane.b32.xlu0 %v444, 32
    %v447 = vpop.permute.xlu0 %446
    %v448 = vsel %vm131, %v447, 0
    %450 = vmatpush.msra.mxu0 0.0
    %451 = vmatpush.msra.mxu0 0.0
    %452 = vmatpush.msra.mxu0 0.0
    %453 = vmatpush.msra.mxu0 0.0
    %454 = vmatpush.msra.mxu0 0.0
    %455 = vmatpush.msra.mxu0 0.0
    %456 = vmatpush.msra.mxu0 0.0
    %457 = vmatpush.msra.mxu0 0.0
    %458 = vmatpush.msra.mxu0 0.0
    %459 = vmatpush.msra.mxu0 0.0
    %460 = vmatpush.msra.mxu0 0.0
    %461 = vmatpush.msra.mxu0 0.0
    %462 = vmatpush.msra.mxu0 %v60
    %463 = vmatpush.msra.mxu0 %v59
    %464 = vmatpush.msra.mxu0 %v58
    %465 = vmatpush.msra.mxu0 %v57
    %466 = vmatmul.f32.gmra.mxu0 %v448
    %v467 = vpop.f32.mrf.mxu0
    %v468 = vadd.f32 0.0, %v467
    %469 = vdwg.mxu0
    %v470 = vadd.f32 %v123, %v468
    %v471 = vxor.u32 %v470, 2147483648
    %v472 = vmul.f32 %v471, 1.442695
    %v473 = vpow.pop %v472
    %v474 = vadd.f32 %v473, 1.0
    %v475 = vrcp.pop %v474
    %v476 = vmul.f32 %v474, %v475
    %v477 = vsub.f32 1.0, %v476
    %v478 = vmul.f32 %v475, %v477
    %v479 = vadd.f32 %v475, %v478
    %vm480 = vweird.f32 %v474
    %vm481 = vweird.f32 %v475
    %vm482 = vmor %vm480, %vm481
    %v483 = vsel %vm482, %v475, %v479
    %v484 = vand.u32 2147483647, %v474
    %vm485 = vcmp.eq.f32.partialorder %v484, 8.507059e+37
    %v486 = vand.u32 %v474, 2147483648
    %v487 = vor.u32 1.1754944e-38, %v486
    %v488 = vsel %vm485, %v487, %v483
    %v489 = vmul.f32 1.0, %v488
    %v490 = vtanh.pop %v470
    %v491 = vmul.f32 %v489, %v438
    %493 = vrot.lane.b32.xlu0 %v490, 64
    %v494 = vpop.permute.xlu0 %493
    %v496 = vmul.f32 %v489, %v494
    %498 = vrot.lane.b32.xlu0 %v496, 32
    %v499 = vpop.permute.xlu0 %498
    %v501 = vadd.f32 %v491, %v499
    %v502 = vtanh.pop %v501
    %504 = vrot.lane.b32.xlu0 %v502, 64
    %v505 = vpop.permute.xlu0 %504
    %v507 = vmul.f32 %v489, %v505
    %509 = vrot.lane.b32.xlu0 %v507, 32
    %v510 = vpop.permute.xlu0 %509
    %v511 = vsel %vm131, %v510, 0
    %513 = vmatpush.msra.mxu0 0.0
    %514 = vmatpush.msra.mxu0 0.0
    %515 = vmatpush.msra.mxu0 0.0
    %516 = vmatpush.msra.mxu0 0.0
    %517 = vmatpush.msra.mxu0 0.0
    %518 = vmatpush.msra.mxu0 0.0
    %519 = vmatpush.msra.mxu0 0.0
    %520 = vmatpush.msra.mxu0 0.0
    %521 = vmatpush.msra.mxu0 0.0
    %522 = vmatpush.msra.mxu0 0.0
    %523 = vmatpush.msra.mxu0 0.0
    %524 = vmatpush.msra.mxu0 0.0
    %525 = vmatpush.msra.mxu0 %v60
    %526 = vmatpush.msra.mxu0 %v59
    %527 = vmatpush.msra.mxu0 %v58
    %528 = vmatpush.msra.mxu0 %v57
    %529 = vmatmul.f32.gmra.mxu0 %v511
    %v530 = vpop.f32.mrf.mxu0
    %v531 = vadd.f32 0.0, %v530
    %532 = vdwg.mxu0
    %v533 = vadd.f32 %v126, %v531
    %v534 = vxor.u32 %v533, 2147483648
    %v535 = vmul.f32 %v534, 1.442695
    %v536 = vpow.pop %v535
    %v537 = vadd.f32 %v536, 1.0
    %v538 = vrcp.pop %v537
    %v539 = vmul.f32 %v537, %v538
    %v540 = vsub.f32 1.0, %v539
    %v541 = vmul.f32 %v538, %v540
    %v542 = vadd.f32 %v538, %v541
    %vm543 = vweird.f32 %v537
    %vm544 = vweird.f32 %v538
    %vm545 = vmor %vm543, %vm544
    %v546 = vsel %vm545, %v538, %v542
    %v547 = vand.u32 2147483647, %v537
    %vm548 = vcmp.eq.f32.partialorder %v547, 8.507059e+37
    %v549 = vand.u32 %v537, 2147483648
    %v550 = vor.u32 1.1754944e-38, %v549
    %v551 = vsel %vm548, %v550, %v546
    %v552 = vmul.f32 1.0, %v551
    %v553 = vtanh.pop %v533
    %v554 = vmul.f32 %v552, %v501
    %556 = vrot.lane.b32.xlu0 %v553, 64
    %v557 = vpop.permute.xlu0 %556
    %v559 = vmul.f32 %v552, %v557
    %561 = vrot.lane.b32.xlu0 %v559, 32
    %v562 = vpop.permute.xlu0 %561
    %v564 = vadd.f32 %v554, %v562
    %v565 = vtanh.pop %v564
    %567 = vrot.lane.b32.xlu0 %v565, 64
    %v568 = vpop.permute.xlu0 %567
    %v570 = vmul.f32 %v552, %v568
    %572 = vrot.lane.b32.xlu0 %v570, 32
    %v573 = vpop.permute.xlu0 %572
    %v574 = vsel %vm131, %v573, 0
    %576 = vmatpush.msra.mxu0 0.0
    %577 = vmatpush.msra.mxu0 0.0
    %578 = vmatpush.msra.mxu0 0.0
    %579 = vmatpush.msra.mxu0 0.0
    %580 = vmatpush.msra.mxu0 0.0
    %581 = vmatpush.msra.mxu0 0.0
    %582 = vmatpush.msra.mxu0 0.0
    %583 = vmatpush.msra.mxu0 0.0
    %584 = vmatpush.msra.mxu0 0.0
    %585 = vmatpush.msra.mxu0 0.0
    %586 = vmatpush.msra.mxu0 0.0
    %587 = vmatpush.msra.mxu0 0.0
    %588 = vmatpush.msra.mxu0 %v60
    %589 = vmatpush.msra.mxu0 %v59
    %590 = vmatpush.msra.mxu0 %v58
    %591 = vmatpush.msra.mxu0 %v57
    %592 = vmatmul.f32.gmra.mxu0 %v574
    %v593 = vpop.f32.mrf.mxu0
    %v594 = vadd.f32 0.0, %v593
    %595 = vdwg.mxu0
    %v596 = vadd.f32 %v129, %v594
    %v597 = vxor.u32 %v596, 2147483648
    %v598 = vmul.f32 %v597, 1.442695
    %v599 = vpow.pop %v598
    %v600 = vadd.f32 %v599, 1.0
    %v601 = vrcp.pop %v600
    %v602 = vmul.f32 %v600, %v601
    %v603 = vsub.f32 1.0, %v602
    %v604 = vmul.f32 %v601, %v603
    %v605 = vadd.f32 %v601, %v604
    %vm606 = vweird.f32 %v600
    %vm607 = vweird.f32 %v601
    %vm608 = vmor %vm606, %vm607
    %v609 = vsel %vm608, %v601, %v605
    %v610 = vand.u32 2147483647, %v600
    %vm611 = vcmp.eq.f32.partialorder %v610, 8.507059e+37
    %v612 = vand.u32 %v600, 2147483648
    %v613 = vor.u32 1.1754944e-38, %v612
    %v614 = vsel %vm611, %v613, %v609
    %v615 = vmul.f32 1.0, %v614
    %v616 = vtanh.pop %v596
    %v617 = vmul.f32 %v615, %v564
    %619 = vrot.lane.b32.xlu0 %v616, 64
    %v620 = vpop.permute.xlu0 %619
    %v622 = vmul.f32 %v615, %v620
    %624 = vrot.lane.b32.xlu0 %v622, 32
    %v625 = vpop.permute.xlu0 %624
    %v627 = vadd.f32 %v617, %v625
    %v628 = vtanh.pop %v627
    %630 = vrot.lane.b32.xlu0 %v628, 64
    %v631 = vpop.permute.xlu0 %630
    %v633 = vmul.f32 %v615, %v631
    %v634 = vld [vmem:[%s5] sm:$0xff]
    %v635 = vld [vmem:[%s5 + $0x8] sm:$0xff]
    %v636 = vld [vmem:[%s5 + $0x10] sm:$0xff]
    %v637 = vld [vmem:[%s5 + $0x18] sm:$0xff]
    %v638 = vld [vmem:[#allocation2] sm:$0xff]
    %v639 = vld [vmem:[#allocation2 + $0x8] sm:$0xff]
    %v640 = vld [vmem:[#allocation2 + $0x10] sm:$0xff]
    %v641 = vld [vmem:[#allocation2 + $0x18] sm:$0xff]
    %v642 = vld [vmem:[%s7] sm:$0x1]
    %v644 = vperm.slane %v642, 0
    %647 = vrot.lane.b32.xlu0 %v633, 32
    %v648 = vpop.permute.xlu0 %647
    %v649 = vsel %vm131, %v648, 0
    %651 = vmatpush.msra.mxu0 0.0
    %652 = vmatpush.msra.mxu0 0.0
    %653 = vmatpush.msra.mxu0 0.0
    %654 = vmatpush.msra.mxu0 0.0
    %655 = vmatpush.msra.mxu0 0.0
    %656 = vmatpush.msra.mxu0 0.0
    %657 = vmatpush.msra.mxu0 0.0
    %658 = vmatpush.msra.mxu0 0.0
    %659 = vmatpush.msra.mxu0 0.0
    %660 = vmatpush.msra.mxu0 0.0
    %661 = vmatpush.msra.mxu0 0.0
    %662 = vmatpush.msra.mxu0 0.0
    %663 = vmatpush.msra.mxu0 %v637
    %664 = vmatpush.msra.mxu0 %v636
    %665 = vmatpush.msra.mxu0 %v635
    %666 = vmatpush.msra.mxu0 %v634
    %667 = vmatmul.f32.gmra.mxu0 %v196
    %v668 = vpop.f32.mrf.mxu0
    %v669 = vadd.f32 %v644, %v668
    %670 = vmatmul.f32.gmra.mxu0 %v259
    %v671 = vpop.f32.mrf.mxu0
    %v672 = vadd.f32 %v644, %v671
    %673 = vmatmul.f32.gmra.mxu0 %v322
    %v674 = vpop.f32.mrf.mxu0
    %v675 = vadd.f32 %v644, %v674
    %676 = vmatmul.f32.gmra.mxu0 %v385
    %v677 = vpop.f32.mrf.mxu0
    %v678 = vadd.f32 %v644, %v677
    %679 = vmatmul.f32.gmra.mxu0 %v448
    %v680 = vpop.f32.mrf.mxu0
    %v681 = vadd.f32 %v644, %v680
    %682 = vmatmul.f32.gmra.mxu0 %v511
    %v683 = vpop.f32.mrf.mxu0
    %v684 = vadd.f32 %v644, %v683
    %685 = vmatmul.f32.gmra.mxu0 %v574
    %v686 = vpop.f32.mrf.mxu0
    %v687 = vadd.f32 %v644, %v686
    %688 = vmatmul.f32.gmra.mxu0 %v649
    %v689 = vpop.f32.mrf.mxu0
    %v690 = vadd.f32 %v644, %v689
    %691 = vdwg.mxu0
    %692 = vmatpush.msra.mxu0 0.0
    %693 = vmatpush.msra.mxu0 0.0
    %694 = vmatpush.msra.mxu0 0.0
    %695 = vmatpush.msra.mxu0 0.0
    %696 = vmatpush.msra.mxu0 0.0
    %697 = vmatpush.msra.mxu0 0.0
    %698 = vmatpush.msra.mxu0 0.0
    %699 = vmatpush.msra.mxu0 0.0
    %700 = vmatpush.msra.mxu0 0.0
    %701 = vmatpush.msra.mxu0 0.0
    %702 = vmatpush.msra.mxu0 0.0
    %703 = vmatpush.msra.mxu0 0.0
    %704 = vmatpush.msra.mxu0 %v641
    %705 = vmatpush.msra.mxu0 %v640
    %706 = vmatpush.msra.mxu0 %v639
    %707 = vmatpush.msra.mxu0 %v638
    %708 = vmatmul.f32.gmra.mxu0 %v133
    %v709 = vpop.f32.mrf.mxu0
    %v710 = vadd.f32 0.0, %v709
    %711 = vdwg.mxu0
    %v712 = vadd.f32 %v669, %v710
    %v713 = vxor.u32 %v712, 2147483648
    %v714 = vmul.f32 %v713, 1.442695
    %v715 = vpow.pop %v714
    %v716 = vadd.f32 %v715, 1.0
    %v717 = vrcp.pop %v716
    %v718 = vmul.f32 %v716, %v717
    %v719 = vsub.f32 1.0, %v718
    %v720 = vmul.f32 %v717, %v719
    %v721 = vadd.f32 %v717, %v720
    %vm722 = vweird.f32 %v716
    %vm723 = vweird.f32 %v717
    %vm724 = vmor %vm722, %vm723
    %v725 = vsel %vm724, %v717, %v721
    %v726 = vand.u32 2147483647, %v716
    %vm727 = vcmp.eq.f32.partialorder %v726, 8.507059e+37
    %v728 = vand.u32 %v716, 2147483648
    %v729 = vor.u32 1.1754944e-38, %v728
    %v730 = vsel %vm727, %v729, %v725
    %v731 = vmul.f32 1.0, %v730
    %v732 = vtanh.pop %v712
    %v733 = vmul.f32 %v731, 0.0
    %735 = vrot.lane.b32.xlu0 %v732, 64
    %v736 = vpop.permute.xlu0 %735
    %v738 = vmul.f32 %v731, %v736
    %740 = vrot.lane.b32.xlu0 %v738, 32
    %v741 = vpop.permute.xlu0 %740
    %v743 = vadd.f32 %v733, %v741
    %v744 = vtanh.pop %v743
    %746 = vrot.lane.b32.xlu0 %v744, 64
    %v747 = vpop.permute.xlu0 %746
    %v749 = vmul.f32 %v731, %v747
    %vm750 = vcmp.eq.s32.totalorder %v47, 0
    %v751 = vsel %vm750, 1, 0
    %752 = vset.pattern.permute.xlu0 0
    %753 = vperm.xlu0 %752, %v751
    %v754 = vpop.permute.xlu0 %753
    %vm755 = vcmp.eq.s32.totalorder %v754, 1
    %v756 = vsel %vm755, %v749, 0.0
    %758 = vrot.lane.b32.xlu0 %v749, 32
    %v759 = vpop.permute.xlu0 %758
    %v760 = vsel %vm131, %v759, 0
    %762 = vmatpush.msra.mxu0 0.0
    %763 = vmatpush.msra.mxu0 0.0
    %764 = vmatpush.msra.mxu0 0.0
    %765 = vmatpush.msra.mxu0 0.0
    %766 = vmatpush.msra.mxu0 0.0
    %767 = vmatpush.msra.mxu0 0.0
    %768 = vmatpush.msra.mxu0 0.0
    %769 = vmatpush.msra.mxu0 0.0
    %770 = vmatpush.msra.mxu0 0.0
    %771 = vmatpush.msra.mxu0 0.0
    %772 = vmatpush.msra.mxu0 0.0
    %773 = vmatpush.msra.mxu0 0.0
    %774 = vmatpush.msra.mxu0 %v641
    %775 = vmatpush.msra.mxu0 %v640
    %776 = vmatpush.msra.mxu0 %v639
    %777 = vmatpush.msra.mxu0 %v638
    %778 = vmatmul.f32.gmra.mxu0 %v760
    %v779 = vpop.f32.mrf.mxu0
    %v780 = vadd.f32 0.0, %v779
    %781 = vdwg.mxu0
    %v782 = vadd.f32 %v672, %v780
    %v783 = vxor.u32 %v782, 2147483648
    %v784 = vmul.f32 %v783, 1.442695
    %v785 = vpow.pop %v784
    %v786 = vadd.f32 %v785, 1.0
    %v787 = vrcp.pop %v786
    %v788 = vmul.f32 %v786, %v787
    %v789 = vsub.f32 1.0, %v788
    %v790 = vmul.f32 %v787, %v789
    %v791 = vadd.f32 %v787, %v790
    %vm792 = vweird.f32 %v786
    %vm793 = vweird.f32 %v787
    %vm794 = vmor %vm792, %vm793
    %v795 = vsel %vm794, %v787, %v791
    %v796 = vand.u32 2147483647, %v786
    %vm797 = vcmp.eq.f32.partialorder %v796, 8.507059e+37
    %v798 = vand.u32 %v786, 2147483648
    %v799 = vor.u32 1.1754944e-38, %v798
    %v800 = vsel %vm797, %v799, %v795
    %v801 = vmul.f32 1.0, %v800
    %v802 = vtanh.pop %v782
    %v803 = vmul.f32 %v801, %v743
    %805 = vrot.lane.b32.xlu0 %v802, 64
    %v806 = vpop.permute.xlu0 %805
    %v808 = vmul.f32 %v801, %v806
    %810 = vrot.lane.b32.xlu0 %v808, 32
    %v811 = vpop.permute.xlu0 %810
    %v813 = vadd.f32 %v803, %v811
    %v814 = vtanh.pop %v813
    %816 = vrot.lane.b32.xlu0 %v814, 64
    %v817 = vpop.permute.xlu0 %816
    %v819 = vmul.f32 %v801, %v817
    %vm820 = vcmp.eq.s32.totalorder %v47, 1
    %v821 = vsel %vm820, 1, 0
    %822 = vset.pattern.permute.xlu0 0
    %823 = vperm.xlu0 %822, %v821
    %v824 = vpop.permute.xlu0 %823
    %vm825 = vcmp.eq.s32.totalorder %v824, 1
    %v826 = vsel %vm825, %v819, %v756
    %828 = vrot.lane.b32.xlu0 %v819, 32
    %v829 = vpop.permute.xlu0 %828
    %v830 = vsel %vm131, %v829, 0
    %832 = vmatpush.msra.mxu0 0.0
    %833 = vmatpush.msra.mxu0 0.0
    %834 = vmatpush.msra.mxu0 0.0
    %835 = vmatpush.msra.mxu0 0.0
    %836 = vmatpush.msra.mxu0 0.0
    %837 = vmatpush.msra.mxu0 0.0
    %838 = vmatpush.msra.mxu0 0.0
    %839 = vmatpush.msra.mxu0 0.0
    %840 = vmatpush.msra.mxu0 0.0
    %841 = vmatpush.msra.mxu0 0.0
    %842 = vmatpush.msra.mxu0 0.0
    %843 = vmatpush.msra.mxu0 0.0
    %844 = vmatpush.msra.mxu0 %v641
    %845 = vmatpush.msra.mxu0 %v640
    %846 = vmatpush.msra.mxu0 %v639
    %847 = vmatpush.msra.mxu0 %v638
    %848 = vmatmul.f32.gmra.mxu0 %v830
    %v849 = vpop.f32.mrf.mxu0
    %v850 = vadd.f32 0.0, %v849
    %851 = vdwg.mxu0
    %v852 = vadd.f32 %v675, %v850
    %v853 = vxor.u32 %v852, 2147483648
    %v854 = vmul.f32 %v853, 1.442695
    %v855 = vpow.pop %v854
    %v856 = vadd.f32 %v855, 1.0
    %v857 = vrcp.pop %v856
    %v858 = vmul.f32 %v856, %v857
    %v859 = vsub.f32 1.0, %v858
    %v860 = vmul.f32 %v857, %v859
    %v861 = vadd.f32 %v857, %v860
    %vm862 = vweird.f32 %v856
    %vm863 = vweird.f32 %v857
    %vm864 = vmor %vm862, %vm863
    %v865 = vsel %vm864, %v857, %v861
    %v866 = vand.u32 2147483647, %v856
    %vm867 = vcmp.eq.f32.partialorder %v866, 8.507059e+37
    %v868 = vand.u32 %v856, 2147483648
    %v869 = vor.u32 1.1754944e-38, %v868
    %v870 = vsel %vm867, %v869, %v865
    %v871 = vmul.f32 1.0, %v870
    %v872 = vtanh.pop %v852
    %v873 = vmul.f32 %v871, %v813
    %875 = vrot.lane.b32.xlu0 %v872, 64
    %v876 = vpop.permute.xlu0 %875
    %v878 = vmul.f32 %v871, %v876
    %880 = vrot.lane.b32.xlu0 %v878, 32
    %v881 = vpop.permute.xlu0 %880
    %v883 = vadd.f32 %v873, %v881
    %v884 = vtanh.pop %v883
    %886 = vrot.lane.b32.xlu0 %v884, 64
    %v887 = vpop.permute.xlu0 %886
    %v889 = vmul.f32 %v871, %v887
    %vm890 = vcmp.eq.s32.totalorder %v47, 2
    %v891 = vsel %vm890, 1, 0
    %892 = vset.pattern.permute.xlu0 0
    %893 = vperm.xlu0 %892, %v891
    %v894 = vpop.permute.xlu0 %893
    %vm895 = vcmp.eq.s32.totalorder %v894, 1
    %v896 = vsel %vm895, %v889, %v826
    %898 = vrot.lane.b32.xlu0 %v889, 32
    %v899 = vpop.permute.xlu0 %898
    %v900 = vsel %vm131, %v899, 0
    %902 = vmatpush.msra.mxu0 0.0
    %903 = vmatpush.msra.mxu0 0.0
    %904 = vmatpush.msra.mxu0 0.0
    %905 = vmatpush.msra.mxu0 0.0
    %906 = vmatpush.msra.mxu0 0.0
    %907 = vmatpush.msra.mxu0 0.0
    %908 = vmatpush.msra.mxu0 0.0
    %909 = vmatpush.msra.mxu0 0.0
    %910 = vmatpush.msra.mxu0 0.0
    %911 = vmatpush.msra.mxu0 0.0
    %912 = vmatpush.msra.mxu0 0.0
    %913 = vmatpush.msra.mxu0 0.0
    %914 = vmatpush.msra.mxu0 %v641
    %915 = vmatpush.msra.mxu0 %v640
    %916 = vmatpush.msra.mxu0 %v639
    %917 = vmatpush.msra.mxu0 %v638
    %918 = vmatmul.f32.gmra.mxu0 %v900
    %v919 = vpop.f32.mrf.mxu0
    %v920 = vadd.f32 0.0, %v919
    %921 = vdwg.mxu0
    %v922 = vadd.f32 %v678, %v920
    %v923 = vxor.u32 %v922, 2147483648
    %v924 = vmul.f32 %v923, 1.442695
    %v925 = vpow.pop %v924
    %v926 = vadd.f32 %v925, 1.0
    %v927 = vrcp.pop %v926
    %v928 = vmul.f32 %v926, %v927
    %v929 = vsub.f32 1.0, %v928
    %v930 = vmul.f32 %v927, %v929
    %v931 = vadd.f32 %v927, %v930
    %vm932 = vweird.f32 %v926
    %vm933 = vweird.f32 %v927
    %vm934 = vmor %vm932, %vm933
    %v935 = vsel %vm934, %v927, %v931
    %v936 = vand.u32 2147483647, %v926
    %vm937 = vcmp.eq.f32.partialorder %v936, 8.507059e+37
    %v938 = vand.u32 %v926, 2147483648
    %v939 = vor.u32 1.1754944e-38, %v938
    %v940 = vsel %vm937, %v939, %v935
    %v941 = vmul.f32 1.0, %v940
    %v942 = vtanh.pop %v922
    %v943 = vmul.f32 %v941, %v883
    %945 = vrot.lane.b32.xlu0 %v942, 64
    %v946 = vpop.permute.xlu0 %945
    %v948 = vmul.f32 %v941, %v946
    %950 = vrot.lane.b32.xlu0 %v948, 32
    %v951 = vpop.permute.xlu0 %950
    %v953 = vadd.f32 %v943, %v951
    %v954 = vtanh.pop %v953
    %956 = vrot.lane.b32.xlu0 %v954, 64
    %v957 = vpop.permute.xlu0 %956
    %v959 = vmul.f32 %v941, %v957
    %vm960 = vcmp.eq.s32.totalorder %v47, 3
    %v961 = vsel %vm960, 1, 0
    %962 = vset.pattern.permute.xlu0 0
    %963 = vperm.xlu0 %962, %v961
    %v964 = vpop.permute.xlu0 %963
    %vm965 = vcmp.eq.s32.totalorder %v964, 1
    %v966 = vsel %vm965, %v959, %v896
    %968 = vrot.lane.b32.xlu0 %v959, 32
    %v969 = vpop.permute.xlu0 %968
    %v970 = vsel %vm131, %v969, 0
    %972 = vmatpush.msra.mxu0 0.0
    %973 = vmatpush.msra.mxu0 0.0
    %974 = vmatpush.msra.mxu0 0.0
    %975 = vmatpush.msra.mxu0 0.0
    %976 = vmatpush.msra.mxu0 0.0
    %977 = vmatpush.msra.mxu0 0.0
    %978 = vmatpush.msra.mxu0 0.0
    %979 = vmatpush.msra.mxu0 0.0
    %980 = vmatpush.msra.mxu0 0.0
    %981 = vmatpush.msra.mxu0 0.0
    %982 = vmatpush.msra.mxu0 0.0
    %983 = vmatpush.msra.mxu0 0.0
    %984 = vmatpush.msra.mxu0 %v641
    %985 = vmatpush.msra.mxu0 %v640
    %986 = vmatpush.msra.mxu0 %v639
    %987 = vmatpush.msra.mxu0 %v638
    %988 = vmatmul.f32.gmra.mxu0 %v970
    %v989 = vpop.f32.mrf.mxu0
    %v990 = vadd.f32 0.0, %v989
    %991 = vdwg.mxu0
    %v992 = vadd.f32 %v681, %v990
    %v993 = vxor.u32 %v992, 2147483648
    %v994 = vmul.f32 %v993, 1.442695
    %v995 = vpow.pop %v994
    %v996 = vadd.f32 %v995, 1.0
    %v997 = vrcp.pop %v996
    %v998 = vmul.f32 %v996, %v997
    %v999 = vsub.f32 1.0, %v998
    %v1000 = vmul.f32 %v997, %v999
    %v1001 = vadd.f32 %v997, %v1000
    %vm1002 = vweird.f32 %v996
    %vm1003 = vweird.f32 %v997
    %vm1004 = vmor %vm1002, %vm1003
    %v1005 = vsel %vm1004, %v997, %v1001
    %v1006 = vand.u32 2147483647, %v996
    %vm1007 = vcmp.eq.f32.partialorder %v1006, 8.507059e+37
    %v1008 = vand.u32 %v996, 2147483648
    %v1009 = vor.u32 1.1754944e-38, %v1008
    %v1010 = vsel %vm1007, %v1009, %v1005
    %v1011 = vmul.f32 1.0, %v1010
    %v1012 = vtanh.pop %v992
    %v1013 = vmul.f32 %v1011, %v953
    %1015 = vrot.lane.b32.xlu0 %v1012, 64
    %v1016 = vpop.permute.xlu0 %1015
    %v1018 = vmul.f32 %v1011, %v1016
    %1020 = vrot.lane.b32.xlu0 %v1018, 32
    %v1021 = vpop.permute.xlu0 %1020
    %v1023 = vadd.f32 %v1013, %v1021
    %v1024 = vtanh.pop %v1023
    %1026 = vrot.lane.b32.xlu0 %v1024, 64
    %v1027 = vpop.permute.xlu0 %1026
    %v1029 = vmul.f32 %v1011, %v1027
    %vm1030 = vcmp.eq.s32.totalorder %v47, 4
    %v1031 = vsel %vm1030, 1, 0
    %1032 = vset.pattern.permute.xlu0 0
    %1033 = vperm.xlu0 %1032, %v1031
    %v1034 = vpop.permute.xlu0 %1033
    %vm1035 = vcmp.eq.s32.totalorder %v1034, 1
    %v1036 = vsel %vm1035, %v1029, %v966
    %1038 = vrot.lane.b32.xlu0 %v1029, 32
    %v1039 = vpop.permute.xlu0 %1038
    %v1040 = vsel %vm131, %v1039, 0
    %1042 = vmatpush.msra.mxu0 0.0
    %1043 = vmatpush.msra.mxu0 0.0
    %1044 = vmatpush.msra.mxu0 0.0
    %1045 = vmatpush.msra.mxu0 0.0
    %1046 = vmatpush.msra.mxu0 0.0
    %1047 = vmatpush.msra.mxu0 0.0
    %1048 = vmatpush.msra.mxu0 0.0
    %1049 = vmatpush.msra.mxu0 0.0
    %1050 = vmatpush.msra.mxu0 0.0
    %1051 = vmatpush.msra.mxu0 0.0
    %1052 = vmatpush.msra.mxu0 0.0
    %1053 = vmatpush.msra.mxu0 0.0
    %1054 = vmatpush.msra.mxu0 %v641
    %1055 = vmatpush.msra.mxu0 %v640
    %1056 = vmatpush.msra.mxu0 %v639
    %1057 = vmatpush.msra.mxu0 %v638
    %1058 = vmatmul.f32.gmra.mxu0 %v1040
    %v1059 = vpop.f32.mrf.mxu0
    %v1060 = vadd.f32 0.0, %v1059
    %1061 = vdwg.mxu0
    %v1062 = vadd.f32 %v684, %v1060
    %v1063 = vxor.u32 %v1062, 2147483648
    %v1064 = vmul.f32 %v1063, 1.442695
    %v1065 = vpow.pop %v1064
    %v1066 = vadd.f32 %v1065, 1.0
    %v1067 = vrcp.pop %v1066
    %v1068 = vmul.f32 %v1066, %v1067
    %v1069 = vsub.f32 1.0, %v1068
    %v1070 = vmul.f32 %v1067, %v1069
    %v1071 = vadd.f32 %v1067, %v1070
    %vm1072 = vweird.f32 %v1066
    %vm1073 = vweird.f32 %v1067
    %vm1074 = vmor %vm1072, %vm1073
    %v1075 = vsel %vm1074, %v1067, %v1071
    %v1076 = vand.u32 2147483647, %v1066
    %vm1077 = vcmp.eq.f32.partialorder %v1076, 8.507059e+37
    %v1078 = vand.u32 %v1066, 2147483648
    %v1079 = vor.u32 1.1754944e-38, %v1078
    %v1080 = vsel %vm1077, %v1079, %v1075
    %v1081 = vmul.f32 1.0, %v1080
    %v1082 = vtanh.pop %v1062
    %v1083 = vmul.f32 %v1081, %v1023
    %1085 = vrot.lane.b32.xlu0 %v1082, 64
    %v1086 = vpop.permute.xlu0 %1085
    %v1088 = vmul.f32 %v1081, %v1086
    %1090 = vrot.lane.b32.xlu0 %v1088, 32
    %v1091 = vpop.permute.xlu0 %1090
    %v1093 = vadd.f32 %v1083, %v1091
    %v1094 = vtanh.pop %v1093
    %1096 = vrot.lane.b32.xlu0 %v1094, 64
    %v1097 = vpop.permute.xlu0 %1096
    %v1099 = vmul.f32 %v1081, %v1097
    %vm1100 = vcmp.eq.s32.totalorder %v47, 5
    %v1101 = vsel %vm1100, 1, 0
    %1102 = vset.pattern.permute.xlu0 0
    %1103 = vperm.xlu0 %1102, %v1101
    %v1104 = vpop.permute.xlu0 %1103
    %vm1105 = vcmp.eq.s32.totalorder %v1104, 1
    %v1106 = vsel %vm1105, %v1099, %v1036
    %1108 = vrot.lane.b32.xlu0 %v1099, 32
    %v1109 = vpop.permute.xlu0 %1108
    %v1110 = vsel %vm131, %v1109, 0
    %1112 = vmatpush.msra.mxu0 0.0
    %1113 = vmatpush.msra.mxu0 0.0
    %1114 = vmatpush.msra.mxu0 0.0
    %1115 = vmatpush.msra.mxu0 0.0
    %1116 = vmatpush.msra.mxu0 0.0
    %1117 = vmatpush.msra.mxu0 0.0
    %1118 = vmatpush.msra.mxu0 0.0
    %1119 = vmatpush.msra.mxu0 0.0
    %1120 = vmatpush.msra.mxu0 0.0
    %1121 = vmatpush.msra.mxu0 0.0
    %1122 = vmatpush.msra.mxu0 0.0
    %1123 = vmatpush.msra.mxu0 0.0
    %1124 = vmatpush.msra.mxu0 %v641
    %1125 = vmatpush.msra.mxu0 %v640
    %1126 = vmatpush.msra.mxu0 %v639
    %1127 = vmatpush.msra.mxu0 %v638
    %1128 = vmatmul.f32.gmra.mxu0 %v1110
    %v1129 = vpop.f32.mrf.mxu0
    %v1130 = vadd.f32 0.0, %v1129
    %1131 = vdwg.mxu0
    %v1132 = vadd.f32 %v687, %v1130
    %v1133 = vxor.u32 %v1132, 2147483648
    %v1134 = vmul.f32 %v1133, 1.442695
    %v1135 = vpow.pop %v1134
    %v1136 = vadd.f32 %v1135, 1.0
    %v1137 = vrcp.pop %v1136
    %v1138 = vmul.f32 %v1136, %v1137
    %v1139 = vsub.f32 1.0, %v1138
    %v1140 = vmul.f32 %v1137, %v1139
    %v1141 = vadd.f32 %v1137, %v1140
    %vm1142 = vweird.f32 %v1136
    %vm1143 = vweird.f32 %v1137
    %vm1144 = vmor %vm1142, %vm1143
    %v1145 = vsel %vm1144, %v1137, %v1141
    %v1146 = vand.u32 2147483647, %v1136
    %vm1147 = vcmp.eq.f32.partialorder %v1146, 8.507059e+37
    %v1148 = vand.u32 %v1136, 2147483648
    %v1149 = vor.u32 1.1754944e-38, %v1148
    %v1150 = vsel %vm1147, %v1149, %v1145
    %v1151 = vmul.f32 1.0, %v1150
    %v1152 = vtanh.pop %v1132
    %v1153 = vmul.f32 %v1151, %v1093
    %1155 = vrot.lane.b32.xlu0 %v1152, 64
    %v1156 = vpop.permute.xlu0 %1155
    %v1158 = vmul.f32 %v1151, %v1156
    %1160 = vrot.lane.b32.xlu0 %v1158, 32
    %v1161 = vpop.permute.xlu0 %1160
    %v1163 = vadd.f32 %v1153, %v1161
    %v1164 = vtanh.pop %v1163
    %1166 = vrot.lane.b32.xlu0 %v1164, 64
    %v1167 = vpop.permute.xlu0 %1166
    %v1169 = vmul.f32 %v1151, %v1167
    %vm1170 = vcmp.eq.s32.totalorder %v47, 6
    %v1171 = vsel %vm1170, 1, 0
    %1172 = vset.pattern.permute.xlu0 0
    %1173 = vperm.xlu0 %1172, %v1171
    %v1174 = vpop.permute.xlu0 %1173
    %vm1175 = vcmp.eq.s32.totalorder %v1174, 1
    %v1176 = vsel %vm1175, %v1169, %v1106
    %1178 = vrot.lane.b32.xlu0 %v1169, 32
    %v1179 = vpop.permute.xlu0 %1178
    %v1180 = vsel %vm131, %v1179, 0
    %1182 = vmatpush.msra.mxu0 0.0
    %1183 = vmatpush.msra.mxu0 0.0
    %1184 = vmatpush.msra.mxu0 0.0
    %1185 = vmatpush.msra.mxu0 0.0
    %1186 = vmatpush.msra.mxu0 0.0
    %1187 = vmatpush.msra.mxu0 0.0
    %1188 = vmatpush.msra.mxu0 0.0
    %1189 = vmatpush.msra.mxu0 0.0
    %1190 = vmatpush.msra.mxu0 0.0
    %1191 = vmatpush.msra.mxu0 0.0
    %1192 = vmatpush.msra.mxu0 0.0
    %1193 = vmatpush.msra.mxu0 0.0
    %1194 = vmatpush.msra.mxu0 %v641
    %1195 = vmatpush.msra.mxu0 %v640
    %1196 = vmatpush.msra.mxu0 %v639
    %1197 = vmatpush.msra.mxu0 %v638
    %1198 = vmatmul.f32.gmra.mxu0 %v1180
    %v1199 = vpop.f32.mrf.mxu0
    %v1200 = vadd.f32 0.0, %v1199
    %1201 = vdwg.mxu0
    %v1202 = vadd.f32 %v690, %v1200
    %v1203 = vxor.u32 %v1202, 2147483648
    %v1204 = vmul.f32 %v1203, 1.442695
    %v1205 = vpow.pop %v1204
    %v1206 = vadd.f32 %v1205, 1.0
    %v1207 = vrcp.pop %v1206
    %v1208 = vmul.f32 %v1206, %v1207
    %v1209 = vsub.f32 1.0, %v1208
    %v1210 = vmul.f32 %v1207, %v1209
    %v1211 = vadd.f32 %v1207, %v1210
    %vm1212 = vweird.f32 %v1206
    %vm1213 = vweird.f32 %v1207
    %vm1214 = vmor %vm1212, %vm1213
    %v1215 = vsel %vm1214, %v1207, %v1211
    %v1216 = vand.u32 2147483647, %v1206
    %vm1217 = vcmp.eq.f32.partialorder %v1216, 8.507059e+37
    %v1218 = vand.u32 %v1206, 2147483648
    %v1219 = vor.u32 1.1754944e-38, %v1218
    %v1220 = vsel %vm1217, %v1219, %v1215
    %v1221 = vmul.f32 1.0, %v1220
    %v1222 = vtanh.pop %v1202
    %v1223 = vmul.f32 %v1221, %v1163
    %1225 = vrot.lane.b32.xlu0 %v1222, 64
    %v1226 = vpop.permute.xlu0 %1225
    %v1228 = vmul.f32 %v1221, %v1226
    %1230 = vrot.lane.b32.xlu0 %v1228, 32
    %v1231 = vpop.permute.xlu0 %1230
    %v1233 = vadd.f32 %v1223, %v1231
    %v1234 = vtanh.pop %v1233
    %1236 = vrot.lane.b32.xlu0 %v1234, 64
    %v1237 = vpop.permute.xlu0 %1236
    %v1239 = vmul.f32 %v1221, %v1237
    %vm1240 = vcmp.eq.s32.totalorder %v47, 7
    %v1241 = vsel %vm1240, 1, 0
    %1242 = vset.pattern.permute.xlu0 0
    %1243 = vperm.xlu0 %1242, %v1241
    %v1244 = vpop.permute.xlu0 %1243
    %vm1245 = vcmp.eq.s32.totalorder %v1244, 1
    %v1246 = vsel %vm1245, %v1239, %v1176
    %1248 = vrot.lane.b32.xlu0 %v1246, 32
    %v1249 = vpop.permute.xlu0 %1248
    %1251 = vst.msk [vmem:[#allocation5] sm:$0xff] %vm131, %v1249
    // Predicated region
    $region38: #{tpu_custom_call.1} parent=1 // pred_check
      _
    $region39: #{tpu_custom_call.1} parent=1 // pred_check_branch
      %1253 = sbr.rel (0) target = $region41
    $region40: #{tpu_custom_call.1} parent=1 // pred_region
      %1255 = vsyncadd [#allocation4], 0
      %s1257 = sshll.u32 [#allocation5], 4
      %s1258 = int_to_ptr.vmem [resolvable:$true] %s1257
      %s1259 = sshll.u32 %s8, 4
      %s1260 = int_to_ptr.hbm [resolvable:$true] %s1259
      %1262 = dma.vmem_to_hbm [thread:$0]  %s1258, 128, %s1260, [#allocation4]
    $region41: #{tpu_custom_call.1} parent=1 // pred_fallthru
      _
    // Predicated region
    $region42: #{tpu_custom_call.1} parent=1 // pred_check
      _
    $region43: #{tpu_custom_call.1} parent=1 // pred_check_branch
      %1264 = sbr.rel (0) target = $region45
    $region44: #{tpu_custom_call.1} parent=1 // pred_region
      %1266 = dma.done [#allocation4], 128
    $region45: #{tpu_custom_call.1} parent=1 // pred_fallthru
      _
    %1267 = vsyncpa [#allocation3], 1
    %1268 = vsyncpa [#allocation4], 1

</llo_original>
